<compile_context>
chip_gen: v7x
topology: tpu7x:2x2x1
jax: 0.10.0
libtpu: 0.0.40
codegen_flags: <defaults>
</compile_context>

<pallas_src>
import functools

import jax
import jax.numpy as jnp
from jax import lax
from jax.experimental import pallas as pl
from jax.experimental.pallas import tpu as pltpu

# 3x3 tap offsets, row-major over (ky, kx): k = (dy+1)*3 + (dx+1)
_OFFSETS = tuple((dy, dx) for dy in (-1, 0, 1) for dx in (-1, 0, 1))


# ---------------------------------------------------------------------------
# Pallas kernel
# ---------------------------------------------------------------------------
def bnet_kernel(x_ref, w1_ref, w2_ref, mask_ref, o_ref, p_ref, *, W, C):
    """Nb images per grid step; layout (C, Nb*H*W) with Nb*H*W on the lane axis."""
    L = x_ref.shape[-1]                      # lane width = Nb * H * W
    T = w1_ref.shape[0]
    KP = w1_ref.shape[2]                     # 9*C taps + 1 bias row, padded to 128
    KB = 9 * C

    # (Re)write the constant pad rows of the im2col scratch: row KB is the
    # all-ones "bias" row, rows KB+1.. are zeros.  Done unconditionally each
    # grid step so it is correct under "parallel" (megacore) grid sharding.
    row_ids = lax.broadcasted_iota(jnp.int32, (KP - KB, L), 0)
    p_ref[KB:, :] = (row_ids == 0).astype(p_ref.dtype)

    masks = mask_ref[...]                    # (9, L) boundary masks, loaded once

    def conv3x3(m, w_t):
        # m: (C, L) f32 activation; w_t: (C, KP) bf16 -- BN folded into the tap
        # columns [0, 9C), folded bias in column 9C (matched by the ones row).
        for k, (dy, dx) in enumerate(_OFFSETS):
            s = dy * W + dx                                  # flat lane offset of this tap
            p = m if s == 0 else pltpu.roll(m, shift=(-s) % L, axis=1)
            if (dy, dx) != (0, 0):
                p = p * masks[k:k + 1, :]                    # zero wrapped / out-of-image lanes
            p_ref[k * C:(k + 1) * C, :] = p                  # aligned 8-row f32 stores
        # One native bf16 MXU pass per conv: (C, KP) @ (KP, L) with f32 accumulation.
        return jnp.dot(w_t, p_ref[...].astype(jnp.bfloat16),
                       preferred_element_type=jnp.float32)

    B = x_ref[...].astype(jnp.float32)                       # (C, L) residual state
    for t in range(T):                                       # T=2: keep statically unrolled
        y = jnp.maximum(conv3x3(B, w1_ref[t]), 0.0)          # conv1 + folded BN1 + ReLU
        y = conv3x3(y, w2_ref[t])                            # conv2 + folded BN2
        B = jnp.maximum(B + y, 0.0)                          # relu(B + block(B))

    o_ref[...] = B.astype(o_ref.dtype)


# ---------------------------------------------------------------------------
# Host wrapper
# ---------------------------------------------------------------------------
def bnet_pallas(x_nchw, w1_packed, w2_packed, tap_masks_hw, *, images_per_step=None):
    N, C, H, W = x_nchw.shape
    HW = H * W
    T, _, KP = w1_packed.shape

    if images_per_step is None:
        # >=2 grid steps when possible so both TCs on v7x get work; on 1-TC
        # v5e/v6e pass images_per_step=N for a single maximal chunk instead.
        images_per_step = (N // 2) if (N % 2 == 0 and N >= 2) else 1
    assert N % images_per_step == 0
    G = N // images_per_step
    L = images_per_step * HW

    # Lane-dense layout: x[n,c,h,w] -> x_cl[c, n*HW + h*W + w].
    x_cl = jnp.transpose(x_nchw, (1, 0, 2, 3)).reshape(C, N * HW)
    masks = jnp.tile(tap_masks_hw, (1, images_per_step))     # (9, L), per-image tiled

    flops = 2 * C * KP * (N * HW) * 2 * T                    # two convs per block, T blocks
    bytes_accessed = (2 * N * C * HW) * 4 + 2 * T * C * KP * 2 + 9 * L * 4

    out_cl = pl.pallas_call(
        functools.partial(bnet_kernel, W=W, C=C),
        out_shape=jax.ShapeDtypeStruct((C, N * HW), x_nchw.dtype),
        grid=(G,),
        in_specs=[
            pl.BlockSpec((C, L), lambda g: (0, g)),          # Nb images, lane-dense
            pl.BlockSpec((T, C, KP), lambda g: (0, 0, 0)),   # conv1 weights+bias (bf16, BN folded)
            pl.BlockSpec((T, C, KP), lambda g: (0, 0, 0)),   # conv2 weights+bias (bf16, BN folded)
            pl.BlockSpec((9, L), lambda g: (0, 0)),          # per-tap boundary masks
        ],
        out_specs=pl.BlockSpec((C, L), lambda g: (0, g)),
        scratch_shapes=[pltpu.VMEM((KP, L), jnp.float32)],   # persistent im2col scratch
        compiler_params=pltpu.CompilerParams(
            dimension_semantics=("parallel",)),              # 2 TCs on v7x
        cost_estimate=pl.CostEstimate(flops=flops, transcendentals=0,
                                      bytes_accessed=bytes_accessed),
    )(x_cl, w1_packed, w2_packed, masks)

    return jnp.transpose(out_cl.reshape(C, N, H, W), (1, 0, 2, 3))


# ---------------------------------------------------------------------------
# Host-side packing helpers (BN fold, weight+bias packing, boundary masks)
# ---------------------------------------------------------------------------
def _fold_bn(w, b, gamma, beta, mean, var, eps=1e-5):
    # w: (T, 3, 3, Cin, Cout) HWIO per block; others: (T, Cout)
    scale = gamma / jnp.sqrt(var + eps)
    w_eff = w * scale[:, None, None, None, :]
    b_eff = (b - mean) * scale + beta
    return w_eff, b_eff


def _pack_weights(w_eff, b_eff, kp):
    # (T, 3, 3, Cin, Cout), (T, Cout) -> (T, Cout, kp) bf16.  Column layout:
    #   cols [0, 9*Cin): im2col taps, col = (ky*3 + kx)*Cin + cin  (matches P rows)
    #   col 9*Cin      : folded bias (paired with the constant ones row of P)
    #   cols beyond    : zero padding up to the 128-aligned contraction width
    T, _, _, Cin, Cout = w_eff.shape
    wp = jnp.transpose(w_eff, (0, 4, 1, 2, 3)).reshape(T, Cout, 9 * Cin)
    packed = jnp.concatenate(
        [wp, b_eff[:, :, None], jnp.zeros((T, Cout, kp - 9 * Cin - 1), w_eff.dtype)],
        axis=2)
    return packed.astype(jnp.bfloat16)


def _make_tap_masks(H, W):
    h = jnp.arange(H)[:, None]
    w = jnp.arange(W)[None, :]
    rows = []
    for dy, dx in _OFFSETS:
        ok = (h + dy >= 0) & (h + dy < H) & (w + dx >= 0) & (w + dx < W)
        rows.append(ok.reshape(-1))
    return jnp.stack(rows).astype(jnp.float32)               # (9, H*W)


def init_params(key, T, C):
    ks = jax.random.split(key, 12)

    def conv(kw, kb):
        w = 0.1 * jax.random.normal(kw, (T, 3, 3, C, C), jnp.float32)  # HWIO per block
        b = 0.1 * jax.random.normal(kb, (T, C), jnp.float32)
        return w, b

    def bn(k0, k1, k2, k3):
        gamma = 1.0 + 0.1 * jax.random.normal(k0, (T, C), jnp.float32)
        beta = 0.1 * jax.random.normal(k1, (T, C), jnp.float32)
        mean = 0.1 * jax.random.normal(k2, (T, C), jnp.float32)
        var = 1.0 + 0.1 * jnp.abs(jax.random.normal(k3, (T, C), jnp.float32))
        return gamma, beta, mean, var

    w1, b1 = conv(ks[0], ks[1])
    w2, b2 = conv(ks[2], ks[3])
    bn1 = bn(ks[4], ks[5], ks[6], ks[7])
    bn2 = bn(ks[8], ks[9], ks[10], ks[11])

    w1_eff, b1_eff = _fold_bn(w1, b1, *bn1)
    w2_eff, b2_eff = _fold_bn(w2, b2, *bn2)
    return (w1_eff, b1_eff), (w2_eff, b2_eff)


# ---------------------------------------------------------------------------
# Pure-JAX reference (same folded params) for the correctness checks.
# mxu_dtype=bfloat16 reproduces the kernel's bf16-at-the-MXU rounding exactly
# (f32 accumulation both sides); mxu_dtype=float32 is the full-precision model.
# ---------------------------------------------------------------------------
def bnet_ref(x_nchw, w1_eff, b1, w2_eff, b2, mxu_dtype=jnp.float32):
    T, C = b1.shape
    x = jnp.transpose(x_nchw, (0, 2, 3, 1))                  # NCHW -> NHWC
    dn = ("NHWC", "HWIO", "NHWC")
    prec = lax.Precision.HIGHEST if mxu_dtype == jnp.float32 else None

    def conv(m, w, b):
        y = lax.conv_general_dilated(
            m.astype(mxu_dtype), w.astype(mxu_dtype), (1, 1), "SAME",
            dimension_numbers=dn, preferred_element_type=jnp.float32,
            precision=prec)
        return y + b.astype(mxu_dtype).astype(jnp.float32).reshape(1, 1, 1, C)

    B = x.astype(jnp.float32)
    for t in range(T):
        y = jnp.maximum(conv(B, w1_eff[t], b1[t]), 0.0)
        y = conv(y, w2_eff[t], b2[t])
        B = jnp.maximum(B + y, 0.0)
    return jnp.transpose(B, (0, 3, 1, 2))                    # back to NCHW


# ---------------------------------------------------------------------------
if __name__ == "__main__":
    # Bnet: channels = args.num_Z + 3. num_Z = 5 -> 8 channels (sublane aligned),
    # args.T = 2 resblocks, small spatial size, 4 images (2 lane-batched per step).
    NUM_Z, T = 5, 2
    C = NUM_Z + 3
    N, H, W = 4, 16, 16
    KP = 128 * pl.cdiv(9 * C + 1, 128)     # 9C taps + 1 bias row, padded to 128

    key = jax.random.PRNGKey(0)
    k_x, k_p = jax.random.split(key)

    # Input in the PyTorch NCHW convention.
    x = jax.random.normal(k_x, (N, C, H, W), jnp.float32)

    (w1_eff, b1_eff), (w2_eff, b2_eff) = init_params(k_p, T, C)

    # Kernel-side dense packing (bf16 weights, bias folded into column 9*C).
    w1_packed = _pack_weights(w1_eff, b1_eff, KP)
    w2_packed = _pack_weights(w2_eff, b2_eff, KP)
    tap_masks = _make_tap_masks(H, W)

    out = bnet_pallas(x, w1_packed, w2_packed, tap_masks)
    out = jax.block_until_ready(out)
    assert out.shape == (N, C, H, W)

    # Tight structural check vs a reference with identical bf16 MXU rounding.
    ref_bf16 = bnet_ref(x, w1_eff, b1_eff, w2_eff, b2_eff, mxu_dtype=jnp.bfloat16)
    err_bf16 = float(jnp.max(jnp.abs(out - ref_bf16)))
    assert err_bf16 < 5e-3, f"kernel vs bf16-matched reference mismatch: {err_bf16}"

    # Loose semantic check vs the full-f32 reference (single-pass bf16 MXU
    # rounding compounds over the T-block residual chain).
    ref_f32 = bnet_ref(x, w1_eff, b1_eff, w2_eff, b2_eff, mxu_dtype=jnp.float32)
    err_f32 = float(jnp.max(jnp.abs(out - ref_f32)))
    assert err_f32 < 1e-1, f"kernel vs f32 reference mismatch: {err_f32}"

    print("KERNEL_OK")
</pallas_src>

<mosaic_0001>
module attributes {stable_mosaic.version = 11 : i64} {
  func.func @bnet_kernel(%arg0: i32, %arg1: memref<8x512xf32, #tpu.memory_space<vmem>>, %arg2: memref<2x8x128xbf16, #tpu.memory_space<vmem>>, %arg3: memref<2x8x128xbf16, #tpu.memory_space<vmem>>, %arg4: memref<9x512xf32, #tpu.memory_space<vmem>>, %arg5: memref<8x512xf32, #tpu.memory_space<vmem>>, %arg6: memref<128x512xf32, #tpu.memory_space<vmem>>) attributes {dimension_semantics = [#tpu.dimension_semantics<parallel>], iteration_bounds = array<i64: 2>, scalar_prefetch = 0 : i64, scratch_operands = 1 : i64, tpu.core_type = #tpu.core_type<tc>, window_params = [{transform_indices = @transform_0, window_bounds = array<i64: 8, 512>}, {pipeline_mode = #tpu.pipeline_mode<synchronous>, transform_indices = @transform_1, window_bounds = array<i64: 2, 8, 128>}, {pipeline_mode = #tpu.pipeline_mode<synchronous>, transform_indices = @transform_2, window_bounds = array<i64: 2, 8, 128>}, {pipeline_mode = #tpu.pipeline_mode<synchronous>, transform_indices = @transform_3, window_bounds = array<i64: 9, 512>}, {transform_indices = @transform_4, window_bounds = array<i64: 8, 512>}]} {
    %0 = tpu.iota {dimensions = array<i32: 0>} : vector<56x512xi32>
    %c0_i32 = arith.constant 0 : i32
    %1 = vector.broadcast %c0_i32 : i32 to vector<56x512xi32>
    %2 = arith.cmpi eq, %0, %1 : vector<56x512xi32>
    %3 = arith.extui %2 : vector<56x512xi1> to vector<56x512xi32>
    %4 = arith.sitofp %3 : vector<56x512xi32> to vector<56x512xf32>
    %c72 = arith.constant 72 : index
    %c0 = arith.constant 0 : index
    %5 = vector.load %arg6[%c72, %c0] : memref<128x512xf32, #tpu.memory_space<vmem>>, vector<56x512xf32>
    tpu.vector_store %arg6[%c72, %c0], %4 {strides = array<i32>} : memref<128x512xf32, #tpu.memory_space<vmem>>, vector<56x512xf32>,
    %c0_0 = arith.constant 0 : index
    %c0_1 = arith.constant 0 : index
    %6 = vector.load %arg4[%c0_0, %c0_1] : memref<9x512xf32, #tpu.memory_space<vmem>>, vector<9x512xf32>
    %c0_2 = arith.constant 0 : index
    %c0_3 = arith.constant 0 : index
    %7 = vector.load %arg1[%c0_2, %c0_3] : memref<8x512xf32, #tpu.memory_space<vmem>>, vector<8x512xf32>
    %c0_4 = arith.constant 0 : index
    %c0_5 = arith.constant 0 : index
    %c0_6 = arith.constant 0 : index
    %8 = vector.load %arg2[%c0_4, %c0_5, %c0_6] : memref<2x8x128xbf16, #tpu.memory_space<vmem>>, vector<1x8x128xbf16>
    %9 = vector.shape_cast %8 : vector<1x8x128xbf16> to vector<8x128xbf16>
    %c17_i32 = arith.constant 17 : i32
    %10 = tpu.dynamic_rotate %7 by %c17_i32 dim 1 : vector<8x512xf32>, i32 -> vector<8x512xf32>
    %11 = vector.extract_strided_slice %6 {offsets = [0, 0], sizes = [1, 512], strides = [1, 1]} : vector<9x512xf32> to vector<1x512xf32>
    %12 = vector.broadcast %11 : vector<1x512xf32> to vector<8x512xf32>
    %13 = arith.mulf %10, %12 : vector<8x512xf32>
    %c0_7 = arith.constant 0 : index
    %c0_8 = arith.constant 0 : index
    %14 = vector.load %arg6[%c0_7, %c0_8] : memref<128x512xf32, #tpu.memory_space<vmem>>, vector<8x512xf32>
    tpu.vector_store %arg6[%c0_7, %c0_8], %13 {strides = array<i32>} : memref<128x512xf32, #tpu.memory_space<vmem>>, vector<8x512xf32>,
    %c16_i32 = arith.constant 16 : i32
    %15 = tpu.dynamic_rotate %7 by %c16_i32 dim 1 : vector<8x512xf32>, i32 -> vector<8x512xf32>
    %16 = vector.extract_strided_slice %6 {offsets = [1, 0], sizes = [1, 512], strides = [1, 1]} : vector<9x512xf32> to vector<1x512xf32>
    %17 = vector.broadcast %16 : vector<1x512xf32> to vector<8x512xf32>
    %18 = arith.mulf %15, %17 : vector<8x512xf32>
    %c8 = arith.constant 8 : index
    %c0_9 = arith.constant 0 : index
    %19 = vector.load %arg6[%c8, %c0_9] : memref<128x512xf32, #tpu.memory_space<vmem>>, vector<8x512xf32>
    tpu.vector_store %arg6[%c8, %c0_9], %18 {strides = array<i32>} : memref<128x512xf32, #tpu.memory_space<vmem>>, vector<8x512xf32>,
    %c15_i32 = arith.constant 15 : i32
    %20 = tpu.dynamic_rotate %7 by %c15_i32 dim 1 : vector<8x512xf32>, i32 -> vector<8x512xf32>
    %21 = vector.extract_strided_slice %6 {offsets = [2, 0], sizes = [1, 512], strides = [1, 1]} : vector<9x512xf32> to vector<1x512xf32>
    %22 = vector.broadcast %21 : vector<1x512xf32> to vector<8x512xf32>
    %23 = arith.mulf %20, %22 : vector<8x512xf32>
    %c16 = arith.constant 16 : index
    %c0_10 = arith.constant 0 : index
    %24 = vector.load %arg6[%c16, %c0_10] : memref<128x512xf32, #tpu.memory_space<vmem>>, vector<8x512xf32>
    tpu.vector_store %arg6[%c16, %c0_10], %23 {strides = array<i32>} : memref<128x512xf32, #tpu.memory_space<vmem>>, vector<8x512xf32>,
    %c1_i32 = arith.constant 1 : i32
    %25 = tpu.dynamic_rotate %7 by %c1_i32 dim 1 : vector<8x512xf32>, i32 -> vector<8x512xf32>
    %26 = vector.extract_strided_slice %6 {offsets = [3, 0], sizes = [1, 512], strides = [1, 1]} : vector<9x512xf32> to vector<1x512xf32>
    %27 = vector.broadcast %26 : vector<1x512xf32> to vector<8x512xf32>
    %28 = arith.mulf %25, %27 : vector<8x512xf32>
    %c24 = arith.constant 24 : index
    %c0_11 = arith.constant 0 : index
    %29 = vector.load %arg6[%c24, %c0_11] : memref<128x512xf32, #tpu.memory_space<vmem>>, vector<8x512xf32>
    tpu.vector_store %arg6[%c24, %c0_11], %28 {strides = array<i32>} : memref<128x512xf32, #tpu.memory_space<vmem>>, vector<8x512xf32>,
    %c32 = arith.constant 32 : index
    %c0_12 = arith.constant 0 : index
    %30 = vector.load %arg6[%c32, %c0_12] : memref<128x512xf32, #tpu.memory_space<vmem>>, vector<8x512xf32>
    tpu.vector_store %arg6[%c32, %c0_12], %7 {strides = array<i32>} : memref<128x512xf32, #tpu.memory_space<vmem>>, vector<8x512xf32>,
    %c511_i32 = arith.constant 511 : i32
    %31 = tpu.dynamic_rotate %7 by %c511_i32 dim 1 : vector<8x512xf32>, i32 -> vector<8x512xf32>
    %32 = vector.extract_strided_slice %6 {offsets = [5, 0], sizes = [1, 512], strides = [1, 1]} : vector<9x512xf32> to vector<1x512xf32>
    %33 = vector.broadcast %32 : vector<1x512xf32> to vector<8x512xf32>
    %34 = arith.mulf %31, %33 : vector<8x512xf32>
    %c40 = arith.constant 40 : index
    %c0_13 = arith.constant 0 : index
    %35 = vector.load %arg6[%c40, %c0_13] : memref<128x512xf32, #tpu.memory_space<vmem>>, vector<8x512xf32>
    tpu.vector_store %arg6[%c40, %c0_13], %34 {strides = array<i32>} : memref<128x512xf32, #tpu.memory_space<vmem>>, vector<8x512xf32>,
    %c497_i32 = arith.constant 497 : i32
    %36 = tpu.dynamic_rotate %7 by %c497_i32 dim 1 : vector<8x512xf32>, i32 -> vector<8x512xf32>
    %37 = vector.extract_strided_slice %6 {offsets = [6, 0], sizes = [1, 512], strides = [1, 1]} : vector<9x512xf32> to vector<1x512xf32>
    %38 = vector.broadcast %37 : vector<1x512xf32> to vector<8x512xf32>
    %39 = arith.mulf %36, %38 : vector<8x512xf32>
    %c48 = arith.constant 48 : index
    %c0_14 = arith.constant 0 : index
    %40 = vector.load %arg6[%c48, %c0_14] : memref<128x512xf32, #tpu.memory_space<vmem>>, vector<8x512xf32>
    tpu.vector_store %arg6[%c48, %c0_14], %39 {strides = array<i32>} : memref<128x512xf32, #tpu.memory_space<vmem>>, vector<8x512xf32>,
    %c496_i32 = arith.constant 496 : i32
    %41 = tpu.dynamic_rotate %7 by %c496_i32 dim 1 : vector<8x512xf32>, i32 -> vector<8x512xf32>
    %42 = vector.extract_strided_slice %6 {offsets = [7, 0], sizes = [1, 512], strides = [1, 1]} : vector<9x512xf32> to vector<1x512xf32>
    %43 = vector.broadcast %42 : vector<1x512xf32> to vector<8x512xf32>
    %44 = arith.mulf %41, %43 : vector<8x512xf32>
    %c56 = arith.constant 56 : index
    %c0_15 = arith.constant 0 : index
    %45 = vector.load %arg6[%c56, %c0_15] : memref<128x512xf32, #tpu.memory_space<vmem>>, vector<8x512xf32>
    tpu.vector_store %arg6[%c56, %c0_15], %44 {strides = array<i32>} : memref<128x512xf32, #tpu.memory_space<vmem>>, vector<8x512xf32>,
    %c495_i32 = arith.constant 495 : i32
    %46 = tpu.dynamic_rotate %7 by %c495_i32 dim 1 : vector<8x512xf32>, i32 -> vector<8x512xf32>
    %47 = vector.extract_strided_slice %6 {offsets = [8, 0], sizes = [1, 512], strides = [1, 1]} : vector<9x512xf32> to vector<1x512xf32>
    %48 = vector.broadcast %47 : vector<1x512xf32> to vector<8x512xf32>
    %49 = arith.mulf %46, %48 : vector<8x512xf32>
    %c64 = arith.constant 64 : index
    %c0_16 = arith.constant 0 : index
    %50 = vector.load %arg6[%c64, %c0_16] : memref<128x512xf32, #tpu.memory_space<vmem>>, vector<8x512xf32>
    tpu.vector_store %arg6[%c64, %c0_16], %49 {strides = array<i32>} : memref<128x512xf32, #tpu.memory_space<vmem>>, vector<8x512xf32>,
    %c0_17 = arith.constant 0 : index
    %c0_18 = arith.constant 0 : index
    %51 = vector.load %arg6[%c0_17, %c0_18] : memref<128x512xf32, #tpu.memory_space<vmem>>, vector<128x512xf32>
    %52 = arith.truncf %51 : vector<128x512xf32> to vector<128x512xbf16>
    %cst = arith.constant dense<0.000000e+00> : vector<8x512xf32>
    %53 = tpu.matmul %9, %52, %cst {dimension_numbers = #tpu.dot_dimension_numbers<[1], [0], [0], [1], [0, 0, 1, 1], [], []>} : vector<8x128xbf16>, vector<128x512xbf16>, vector<8x512xf32> -> vector<8x512xf32>
    %cst_19 = arith.constant 0.000000e+00 : f32
    %54 = vector.broadcast %cst_19 : f32 to vector<8x512xf32>
    %55 = arith.maximumf %53, %54 : vector<8x512xf32>
    %c0_20 = arith.constant 0 : index
    %c0_21 = arith.constant 0 : index
    %c0_22 = arith.constant 0 : index
    %56 = vector.load %arg3[%c0_20, %c0_21, %c0_22] : memref<2x8x128xbf16, #tpu.memory_space<vmem>>, vector<1x8x128xbf16>
    %57 = vector.shape_cast %56 : vector<1x8x128xbf16> to vector<8x128xbf16>
    %c17_i32_23 = arith.constant 17 : i32
    %58 = tpu.dynamic_rotate %55 by %c17_i32_23 dim 1 : vector<8x512xf32>, i32 -> vector<8x512xf32>
    %59 = vector.extract_strided_slice %6 {offsets = [0, 0], sizes = [1, 512], strides = [1, 1]} : vector<9x512xf32> to vector<1x512xf32>
    %60 = vector.broadcast %59 : vector<1x512xf32> to vector<8x512xf32>
    %61 = arith.mulf %58, %60 : vector<8x512xf32>
    %c0_24 = arith.constant 0 : index
    %c0_25 = arith.constant 0 : index
    %62 = vector.load %arg6[%c0_24, %c0_25] : memref<128x512xf32, #tpu.memory_space<vmem>>, vector<8x512xf32>
    tpu.vector_store %arg6[%c0_24, %c0_25], %61 {strides = array<i32>} : memref<128x512xf32, #tpu.memory_space<vmem>>, vector<8x512xf32>,
    %c16_i32_26 = arith.constant 16 : i32
    %63 = tpu.dynamic_rotate %55 by %c16_i32_26 dim 1 : vector<8x512xf32>, i32 -> vector<8x512xf32>
    %64 = vector.extract_strided_slice %6 {offsets = [1, 0], sizes = [1, 512], strides = [1, 1]} : vector<9x512xf32> to vector<1x512xf32>
    %65 = vector.broadcast %64 : vector<1x512xf32> to vector<8x512xf32>
    %66 = arith.mulf %63, %65 : vector<8x512xf32>
    %c8_27 = arith.constant 8 : index
    %c0_28 = arith.constant 0 : index
    %67 = vector.load %arg6[%c8_27, %c0_28] : memref<128x512xf32, #tpu.memory_space<vmem>>, vector<8x512xf32>
    tpu.vector_store %arg6[%c8_27, %c0_28], %66 {strides = array<i32>} : memref<128x512xf32, #tpu.memory_space<vmem>>, vector<8x512xf32>,
    %c15_i32_29 = arith.constant 15 : i32
    %68 = tpu.dynamic_rotate %55 by %c15_i32_29 dim 1 : vector<8x512xf32>, i32 -> vector<8x512xf32>
    %69 = vector.extract_strided_slice %6 {offsets = [2, 0], sizes = [1, 512], strides = [1, 1]} : vector<9x512xf32> to vector<1x512xf32>
    %70 = vector.broadcast %69 : vector<1x512xf32> to vector<8x512xf32>
    %71 = arith.mulf %68, %70 : vector<8x512xf32>
    %c16_30 = arith.constant 16 : index
    %c0_31 = arith.constant 0 : index
    %72 = vector.load %arg6[%c16_30, %c0_31] : memref<128x512xf32, #tpu.memory_space<vmem>>, vector<8x512xf32>
    tpu.vector_store %arg6[%c16_30, %c0_31], %71 {strides = array<i32>} : memref<128x512xf32, #tpu.memory_space<vmem>>, vector<8x512xf32>,
    %c1_i32_32 = arith.constant 1 : i32
    %73 = tpu.dynamic_rotate %55 by %c1_i32_32 dim 1 : vector<8x512xf32>, i32 -> vector<8x512xf32>
    %74 = vector.extract_strided_slice %6 {offsets = [3, 0], sizes = [1, 512], strides = [1, 1]} : vector<9x512xf32> to vector<1x512xf32>
    %75 = vector.broadcast %74 : vector<1x512xf32> to vector<8x512xf32>
    %76 = arith.mulf %73, %75 : vector<8x512xf32>
    %c24_33 = arith.constant 24 : index
    %c0_34 = arith.constant 0 : index
    %77 = vector.load %arg6[%c24_33, %c0_34] : memref<128x512xf32, #tpu.memory_space<vmem>>, vector<8x512xf32>
    tpu.vector_store %arg6[%c24_33, %c0_34], %76 {strides = array<i32>} : memref<128x512xf32, #tpu.memory_space<vmem>>, vector<8x512xf32>,
    %c32_35 = arith.constant 32 : index
    %c0_36 = arith.constant 0 : index
    %78 = vector.load %arg6[%c32_35, %c0_36] : memref<128x512xf32, #tpu.memory_space<vmem>>, vector<8x512xf32>
    tpu.vector_store %arg6[%c32_35, %c0_36], %55 {strides = array<i32>} : memref<128x512xf32, #tpu.memory_space<vmem>>, vector<8x512xf32>,
    %c511_i32_37 = arith.constant 511 : i32
    %79 = tpu.dynamic_rotate %55 by %c511_i32_37 dim 1 : vector<8x512xf32>, i32 -> vector<8x512xf32>
    %80 = vector.extract_strided_slice %6 {offsets = [5, 0], sizes = [1, 512], strides = [1, 1]} : vector<9x512xf32> to vector<1x512xf32>
    %81 = vector.broadcast %80 : vector<1x512xf32> to vector<8x512xf32>
    %82 = arith.mulf %79, %81 : vector<8x512xf32>
    %c40_38 = arith.constant 40 : index
    %c0_39 = arith.constant 0 : index
    %83 = vector.load %arg6[%c40_38, %c0_39] : memref<128x512xf32, #tpu.memory_space<vmem>>, vector<8x512xf32>
    tpu.vector_store %arg6[%c40_38, %c0_39], %82 {strides = array<i32>} : memref<128x512xf32, #tpu.memory_space<vmem>>, vector<8x512xf32>,
    %c497_i32_40 = arith.constant 497 : i32
    %84 = tpu.dynamic_rotate %55 by %c497_i32_40 dim 1 : vector<8x512xf32>, i32 -> vector<8x512xf32>
    %85 = vector.extract_strided_slice %6 {offsets = [6, 0], sizes = [1, 512], strides = [1, 1]} : vector<9x512xf32> to vector<1x512xf32>
    %86 = vector.broadcast %85 : vector<1x512xf32> to vector<8x512xf32>
    %87 = arith.mulf %84, %86 : vector<8x512xf32>
    %c48_41 = arith.constant 48 : index
    %c0_42 = arith.constant 0 : index
    %88 = vector.load %arg6[%c48_41, %c0_42] : memref<128x512xf32, #tpu.memory_space<vmem>>, vector<8x512xf32>
    tpu.vector_store %arg6[%c48_41, %c0_42], %87 {strides = array<i32>} : memref<128x512xf32, #tpu.memory_space<vmem>>, vector<8x512xf32>,
    %c496_i32_43 = arith.constant 496 : i32
    %89 = tpu.dynamic_rotate %55 by %c496_i32_43 dim 1 : vector<8x512xf32>, i32 -> vector<8x512xf32>
    %90 = vector.extract_strided_slice %6 {offsets = [7, 0], sizes = [1, 512], strides = [1, 1]} : vector<9x512xf32> to vector<1x512xf32>
    %91 = vector.broadcast %90 : vector<1x512xf32> to vector<8x512xf32>
    %92 = arith.mulf %89, %91 : vector<8x512xf32>
    %c56_44 = arith.constant 56 : index
    %c0_45 = arith.constant 0 : index
    %93 = vector.load %arg6[%c56_44, %c0_45] : memref<128x512xf32, #tpu.memory_space<vmem>>, vector<8x512xf32>
    tpu.vector_store %arg6[%c56_44, %c0_45], %92 {strides = array<i32>} : memref<128x512xf32, #tpu.memory_space<vmem>>, vector<8x512xf32>,
    %c495_i32_46 = arith.constant 495 : i32
    %94 = tpu.dynamic_rotate %55 by %c495_i32_46 dim 1 : vector<8x512xf32>, i32 -> vector<8x512xf32>
    %95 = vector.extract_strided_slice %6 {offsets = [8, 0], sizes = [1, 512], strides = [1, 1]} : vector<9x512xf32> to vector<1x512xf32>
    %96 = vector.broadcast %95 : vector<1x512xf32> to vector<8x512xf32>
    %97 = arith.mulf %94, %96 : vector<8x512xf32>
    %c64_47 = arith.constant 64 : index
    %c0_48 = arith.constant 0 : index
    %98 = vector.load %arg6[%c64_47, %c0_48] : memref<128x512xf32, #tpu.memory_space<vmem>>, vector<8x512xf32>
    tpu.vector_store %arg6[%c64_47, %c0_48], %97 {strides = array<i32>} : memref<128x512xf32, #tpu.memory_space<vmem>>, vector<8x512xf32>,
    %c0_49 = arith.constant 0 : index
    %c0_50 = arith.constant 0 : index
    %99 = vector.load %arg6[%c0_49, %c0_50] : memref<128x512xf32, #tpu.memory_space<vmem>>, vector<128x512xf32>
    %100 = arith.truncf %99 : vector<128x512xf32> to vector<128x512xbf16>
    %cst_51 = arith.constant dense<0.000000e+00> : vector<8x512xf32>
    %101 = tpu.matmul %57, %100, %cst_51 {dimension_numbers = #tpu.dot_dimension_numbers<[1], [0], [0], [1], [0, 0, 1, 1], [], []>} : vector<8x128xbf16>, vector<128x512xbf16>, vector<8x512xf32> -> vector<8x512xf32>
    %102 = arith.addf %7, %101 : vector<8x512xf32>
    %cst_52 = arith.constant 0.000000e+00 : f32
    %103 = vector.broadcast %cst_52 : f32 to vector<8x512xf32>
    %104 = arith.maximumf %102, %103 : vector<8x512xf32>
    %c1 = arith.constant 1 : index
    %c0_53 = arith.constant 0 : index
    %c0_54 = arith.constant 0 : index
    %105 = vector.load %arg2[%c1, %c0_53, %c0_54] : memref<2x8x128xbf16, #tpu.memory_space<vmem>>, vector<1x8x128xbf16>
    %106 = vector.shape_cast %105 : vector<1x8x128xbf16> to vector<8x128xbf16>
    %c17_i32_55 = arith.constant 17 : i32
    %107 = tpu.dynamic_rotate %104 by %c17_i32_55 dim 1 : vector<8x512xf32>, i32 -> vector<8x512xf32>
    %108 = vector.extract_strided_slice %6 {offsets = [0, 0], sizes = [1, 512], strides = [1, 1]} : vector<9x512xf32> to vector<1x512xf32>
    %109 = vector.broadcast %108 : vector<1x512xf32> to vector<8x512xf32>
    %110 = arith.mulf %107, %109 : vector<8x512xf32>
    %c0_56 = arith.constant 0 : index
    %c0_57 = arith.constant 0 : index
    %111 = vector.load %arg6[%c0_56, %c0_57] : memref<128x512xf32, #tpu.memory_space<vmem>>, vector<8x512xf32>
    tpu.vector_store %arg6[%c0_56, %c0_57], %110 {strides = array<i32>} : memref<128x512xf32, #tpu.memory_space<vmem>>, vector<8x512xf32>,
    %c16_i32_58 = arith.constant 16 : i32
    %112 = tpu.dynamic_rotate %104 by %c16_i32_58 dim 1 : vector<8x512xf32>, i32 -> vector<8x512xf32>
    %113 = vector.extract_strided_slice %6 {offsets = [1, 0], sizes = [1, 512], strides = [1, 1]} : vector<9x512xf32> to vector<1x512xf32>
    %114 = vector.broadcast %113 : vector<1x512xf32> to vector<8x512xf32>
    %115 = arith.mulf %112, %114 : vector<8x512xf32>
    %c8_59 = arith.constant 8 : index
    %c0_60 = arith.constant 0 : index
    %116 = vector.load %arg6[%c8_59, %c0_60] : memref<128x512xf32, #tpu.memory_space<vmem>>, vector<8x512xf32>
    tpu.vector_store %arg6[%c8_59, %c0_60], %115 {strides = array<i32>} : memref<128x512xf32, #tpu.memory_space<vmem>>, vector<8x512xf32>,
    %c15_i32_61 = arith.constant 15 : i32
    %117 = tpu.dynamic_rotate %104 by %c15_i32_61 dim 1 : vector<8x512xf32>, i32 -> vector<8x512xf32>
    %118 = vector.extract_strided_slice %6 {offsets = [2, 0], sizes = [1, 512], strides = [1, 1]} : vector<9x512xf32> to vector<1x512xf32>
    %119 = vector.broadcast %118 : vector<1x512xf32> to vector<8x512xf32>
    %120 = arith.mulf %117, %119 : vector<8x512xf32>
    %c16_62 = arith.constant 16 : index
    %c0_63 = arith.constant 0 : index
    %121 = vector.load %arg6[%c16_62, %c0_63] : memref<128x512xf32, #tpu.memory_space<vmem>>, vector<8x512xf32>
    tpu.vector_store %arg6[%c16_62, %c0_63], %120 {strides = array<i32>} : memref<128x512xf32, #tpu.memory_space<vmem>>, vector<8x512xf32>,
    %c1_i32_64 = arith.constant 1 : i32
    %122 = tpu.dynamic_rotate %104 by %c1_i32_64 dim 1 : vector<8x512xf32>, i32 -> vector<8x512xf32>
    %123 = vector.extract_strided_slice %6 {offsets = [3, 0], sizes = [1, 512], strides = [1, 1]} : vector<9x512xf32> to vector<1x512xf32>
    %124 = vector.broadcast %123 : vector<1x512xf32> to vector<8x512xf32>
    %125 = arith.mulf %122, %124 : vector<8x512xf32>
    %c24_65 = arith.constant 24 : index
    %c0_66 = arith.constant 0 : index
    %126 = vector.load %arg6[%c24_65, %c0_66] : memref<128x512xf32, #tpu.memory_space<vmem>>, vector<8x512xf32>
    tpu.vector_store %arg6[%c24_65, %c0_66], %125 {strides = array<i32>} : memref<128x512xf32, #tpu.memory_space<vmem>>, vector<8x512xf32>,
    %c32_67 = arith.constant 32 : index
    %c0_68 = arith.constant 0 : index
    %127 = vector.load %arg6[%c32_67, %c0_68] : memref<128x512xf32, #tpu.memory_space<vmem>>, vector<8x512xf32>
    tpu.vector_store %arg6[%c32_67, %c0_68], %104 {strides = array<i32>} : memref<128x512xf32, #tpu.memory_space<vmem>>, vector<8x512xf32>,
    %c511_i32_69 = arith.constant 511 : i32
    %128 = tpu.dynamic_rotate %104 by %c511_i32_69 dim 1 : vector<8x512xf32>, i32 -> vector<8x512xf32>
    %129 = vector.extract_strided_slice %6 {offsets = [5, 0], sizes = [1, 512], strides = [1, 1]} : vector<9x512xf32> to vector<1x512xf32>
    %130 = vector.broadcast %129 : vector<1x512xf32> to vector<8x512xf32>
    %131 = arith.mulf %128, %130 : vector<8x512xf32>
    %c40_70 = arith.constant 40 : index
    %c0_71 = arith.constant 0 : index
    %132 = vector.load %arg6[%c40_70, %c0_71] : memref<128x512xf32, #tpu.memory_space<vmem>>, vector<8x512xf32>
    tpu.vector_store %arg6[%c40_70, %c0_71], %131 {strides = array<i32>} : memref<128x512xf32, #tpu.memory_space<vmem>>, vector<8x512xf32>,
    %c497_i32_72 = arith.constant 497 : i32
    %133 = tpu.dynamic_rotate %104 by %c497_i32_72 dim 1 : vector<8x512xf32>, i32 -> vector<8x512xf32>
    %134 = vector.extract_strided_slice %6 {offsets = [6, 0], sizes = [1, 512], strides = [1, 1]} : vector<9x512xf32> to vector<1x512xf32>
    %135 = vector.broadcast %134 : vector<1x512xf32> to vector<8x512xf32>
    %136 = arith.mulf %133, %135 : vector<8x512xf32>
    %c48_73 = arith.constant 48 : index
    %c0_74 = arith.constant 0 : index
    %137 = vector.load %arg6[%c48_73, %c0_74] : memref<128x512xf32, #tpu.memory_space<vmem>>, vector<8x512xf32>
    tpu.vector_store %arg6[%c48_73, %c0_74], %136 {strides = array<i32>} : memref<128x512xf32, #tpu.memory_space<vmem>>, vector<8x512xf32>,
    %c496_i32_75 = arith.constant 496 : i32
    %138 = tpu.dynamic_rotate %104 by %c496_i32_75 dim 1 : vector<8x512xf32>, i32 -> vector<8x512xf32>
    %139 = vector.extract_strided_slice %6 {offsets = [7, 0], sizes = [1, 512], strides = [1, 1]} : vector<9x512xf32> to vector<1x512xf32>
    %140 = vector.broadcast %139 : vector<1x512xf32> to vector<8x512xf32>
    %141 = arith.mulf %138, %140 : vector<8x512xf32>
    %c56_76 = arith.constant 56 : index
    %c0_77 = arith.constant 0 : index
    %142 = vector.load %arg6[%c56_76, %c0_77] : memref<128x512xf32, #tpu.memory_space<vmem>>, vector<8x512xf32>
    tpu.vector_store %arg6[%c56_76, %c0_77], %141 {strides = array<i32>} : memref<128x512xf32, #tpu.memory_space<vmem>>, vector<8x512xf32>,
    %c495_i32_78 = arith.constant 495 : i32
    %143 = tpu.dynamic_rotate %104 by %c495_i32_78 dim 1 : vector<8x512xf32>, i32 -> vector<8x512xf32>
    %144 = vector.extract_strided_slice %6 {offsets = [8, 0], sizes = [1, 512], strides = [1, 1]} : vector<9x512xf32> to vector<1x512xf32>
    %145 = vector.broadcast %144 : vector<1x512xf32> to vector<8x512xf32>
    %146 = arith.mulf %143, %145 : vector<8x512xf32>
    %c64_79 = arith.constant 64 : index
    %c0_80 = arith.constant 0 : index
    %147 = vector.load %arg6[%c64_79, %c0_80] : memref<128x512xf32, #tpu.memory_space<vmem>>, vector<8x512xf32>
    tpu.vector_store %arg6[%c64_79, %c0_80], %146 {strides = array<i32>} : memref<128x512xf32, #tpu.memory_space<vmem>>, vector<8x512xf32>,
    %c0_81 = arith.constant 0 : index
    %c0_82 = arith.constant 0 : index
    %148 = vector.load %arg6[%c0_81, %c0_82] : memref<128x512xf32, #tpu.memory_space<vmem>>, vector<128x512xf32>
    %149 = arith.truncf %148 : vector<128x512xf32> to vector<128x512xbf16>
    %cst_83 = arith.constant dense<0.000000e+00> : vector<8x512xf32>
    %150 = tpu.matmul %106, %149, %cst_83 {dimension_numbers = #tpu.dot_dimension_numbers<[1], [0], [0], [1], [0, 0, 1, 1], [], []>} : vector<8x128xbf16>, vector<128x512xbf16>, vector<8x512xf32> -> vector<8x512xf32>
    %cst_84 = arith.constant 0.000000e+00 : f32
    %151 = vector.broadcast %cst_84 : f32 to vector<8x512xf32>
    %152 = arith.maximumf %150, %151 : vector<8x512xf32>
    %c1_85 = arith.constant 1 : index
    %c0_86 = arith.constant 0 : index
    %c0_87 = arith.constant 0 : index
    %153 = vector.load %arg3[%c1_85, %c0_86, %c0_87] : memref<2x8x128xbf16, #tpu.memory_space<vmem>>, vector<1x8x128xbf16>
    %154 = vector.shape_cast %153 : vector<1x8x128xbf16> to vector<8x128xbf16>
    %c17_i32_88 = arith.constant 17 : i32
    %155 = tpu.dynamic_rotate %152 by %c17_i32_88 dim 1 : vector<8x512xf32>, i32 -> vector<8x512xf32>
    %156 = vector.extract_strided_slice %6 {offsets = [0, 0], sizes = [1, 512], strides = [1, 1]} : vector<9x512xf32> to vector<1x512xf32>
    %157 = vector.broadcast %156 : vector<1x512xf32> to vector<8x512xf32>
    %158 = arith.mulf %155, %157 : vector<8x512xf32>
    %c0_89 = arith.constant 0 : index
    %c0_90 = arith.constant 0 : index
    %159 = vector.load %arg6[%c0_89, %c0_90] : memref<128x512xf32, #tpu.memory_space<vmem>>, vector<8x512xf32>
    tpu.vector_store %arg6[%c0_89, %c0_90], %158 {strides = array<i32>} : memref<128x512xf32, #tpu.memory_space<vmem>>, vector<8x512xf32>,
    %c16_i32_91 = arith.constant 16 : i32
    %160 = tpu.dynamic_rotate %152 by %c16_i32_91 dim 1 : vector<8x512xf32>, i32 -> vector<8x512xf32>
    %161 = vector.extract_strided_slice %6 {offsets = [1, 0], sizes = [1, 512], strides = [1, 1]} : vector<9x512xf32> to vector<1x512xf32>
    %162 = vector.broadcast %161 : vector<1x512xf32> to vector<8x512xf32>
    %163 = arith.mulf %160, %162 : vector<8x512xf32>
    %c8_92 = arith.constant 8 : index
    %c0_93 = arith.constant 0 : index
    %164 = vector.load %arg6[%c8_92, %c0_93] : memref<128x512xf32, #tpu.memory_space<vmem>>, vector<8x512xf32>
    tpu.vector_store %arg6[%c8_92, %c0_93], %163 {strides = array<i32>} : memref<128x512xf32, #tpu.memory_space<vmem>>, vector<8x512xf32>,
    %c15_i32_94 = arith.constant 15 : i32
    %165 = tpu.dynamic_rotate %152 by %c15_i32_94 dim 1 : vector<8x512xf32>, i32 -> vector<8x512xf32>
    %166 = vector.extract_strided_slice %6 {offsets = [2, 0], sizes = [1, 512], strides = [1, 1]} : vector<9x512xf32> to vector<1x512xf32>
    %167 = vector.broadcast %166 : vector<1x512xf32> to vector<8x512xf32>
    %168 = arith.mulf %165, %167 : vector<8x512xf32>
    %c16_95 = arith.constant 16 : index
    %c0_96 = arith.constant 0 : index
    %169 = vector.load %arg6[%c16_95, %c0_96] : memref<128x512xf32, #tpu.memory_space<vmem>>, vector<8x512xf32>
    tpu.vector_store %arg6[%c16_95, %c0_96], %168 {strides = array<i32>} : memref<128x512xf32, #tpu.memory_space<vmem>>, vector<8x512xf32>,
    %c1_i32_97 = arith.constant 1 : i32
    %170 = tpu.dynamic_rotate %152 by %c1_i32_97 dim 1 : vector<8x512xf32>, i32 -> vector<8x512xf32>
    %171 = vector.extract_strided_slice %6 {offsets = [3, 0], sizes = [1, 512], strides = [1, 1]} : vector<9x512xf32> to vector<1x512xf32>
    %172 = vector.broadcast %171 : vector<1x512xf32> to vector<8x512xf32>
    %173 = arith.mulf %170, %172 : vector<8x512xf32>
    %c24_98 = arith.constant 24 : index
    %c0_99 = arith.constant 0 : index
    %174 = vector.load %arg6[%c24_98, %c0_99] : memref<128x512xf32, #tpu.memory_space<vmem>>, vector<8x512xf32>
    tpu.vector_store %arg6[%c24_98, %c0_99], %173 {strides = array<i32>} : memref<128x512xf32, #tpu.memory_space<vmem>>, vector<8x512xf32>,
    %c32_100 = arith.constant 32 : index
    %c0_101 = arith.constant 0 : index
    %175 = vector.load %arg6[%c32_100, %c0_101] : memref<128x512xf32, #tpu.memory_space<vmem>>, vector<8x512xf32>
    tpu.vector_store %arg6[%c32_100, %c0_101], %152 {strides = array<i32>} : memref<128x512xf32, #tpu.memory_space<vmem>>, vector<8x512xf32>,
    %c511_i32_102 = arith.constant 511 : i32
    %176 = tpu.dynamic_rotate %152 by %c511_i32_102 dim 1 : vector<8x512xf32>, i32 -> vector<8x512xf32>
    %177 = vector.extract_strided_slice %6 {offsets = [5, 0], sizes = [1, 512], strides = [1, 1]} : vector<9x512xf32> to vector<1x512xf32>
    %178 = vector.broadcast %177 : vector<1x512xf32> to vector<8x512xf32>
    %179 = arith.mulf %176, %178 : vector<8x512xf32>
    %c40_103 = arith.constant 40 : index
    %c0_104 = arith.constant 0 : index
    %180 = vector.load %arg6[%c40_103, %c0_104] : memref<128x512xf32, #tpu.memory_space<vmem>>, vector<8x512xf32>
    tpu.vector_store %arg6[%c40_103, %c0_104], %179 {strides = array<i32>} : memref<128x512xf32, #tpu.memory_space<vmem>>, vector<8x512xf32>,
    %c497_i32_105 = arith.constant 497 : i32
    %181 = tpu.dynamic_rotate %152 by %c497_i32_105 dim 1 : vector<8x512xf32>, i32 -> vector<8x512xf32>
    %182 = vector.extract_strided_slice %6 {offsets = [6, 0], sizes = [1, 512], strides = [1, 1]} : vector<9x512xf32> to vector<1x512xf32>
    %183 = vector.broadcast %182 : vector<1x512xf32> to vector<8x512xf32>
    %184 = arith.mulf %181, %183 : vector<8x512xf32>
    %c48_106 = arith.constant 48 : index
    %c0_107 = arith.constant 0 : index
    %185 = vector.load %arg6[%c48_106, %c0_107] : memref<128x512xf32, #tpu.memory_space<vmem>>, vector<8x512xf32>
    tpu.vector_store %arg6[%c48_106, %c0_107], %184 {strides = array<i32>} : memref<128x512xf32, #tpu.memory_space<vmem>>, vector<8x512xf32>,
    %c496_i32_108 = arith.constant 496 : i32
    %186 = tpu.dynamic_rotate %152 by %c496_i32_108 dim 1 : vector<8x512xf32>, i32 -> vector<8x512xf32>
    %187 = vector.extract_strided_slice %6 {offsets = [7, 0], sizes = [1, 512], strides = [1, 1]} : vector<9x512xf32> to vector<1x512xf32>
    %188 = vector.broadcast %187 : vector<1x512xf32> to vector<8x512xf32>
    %189 = arith.mulf %186, %188 : vector<8x512xf32>
    %c56_109 = arith.constant 56 : index
    %c0_110 = arith.constant 0 : index
    %190 = vector.load %arg6[%c56_109, %c0_110] : memref<128x512xf32, #tpu.memory_space<vmem>>, vector<8x512xf32>
    tpu.vector_store %arg6[%c56_109, %c0_110], %189 {strides = array<i32>} : memref<128x512xf32, #tpu.memory_space<vmem>>, vector<8x512xf32>,
    %c495_i32_111 = arith.constant 495 : i32
    %191 = tpu.dynamic_rotate %152 by %c495_i32_111 dim 1 : vector<8x512xf32>, i32 -> vector<8x512xf32>
    %192 = vector.extract_strided_slice %6 {offsets = [8, 0], sizes = [1, 512], strides = [1, 1]} : vector<9x512xf32> to vector<1x512xf32>
    %193 = vector.broadcast %192 : vector<1x512xf32> to vector<8x512xf32>
    %194 = arith.mulf %191, %193 : vector<8x512xf32>
    %c64_112 = arith.constant 64 : index
    %c0_113 = arith.constant 0 : index
    %195 = vector.load %arg6[%c64_112, %c0_113] : memref<128x512xf32, #tpu.memory_space<vmem>>, vector<8x512xf32>
    tpu.vector_store %arg6[%c64_112, %c0_113], %194 {strides = array<i32>} : memref<128x512xf32, #tpu.memory_space<vmem>>, vector<8x512xf32>,
    %c0_114 = arith.constant 0 : index
    %c0_115 = arith.constant 0 : index
    %196 = vector.load %arg6[%c0_114, %c0_115] : memref<128x512xf32, #tpu.memory_space<vmem>>, vector<128x512xf32>
    %197 = arith.truncf %196 : vector<128x512xf32> to vector<128x512xbf16>
    %cst_116 = arith.constant dense<0.000000e+00> : vector<8x512xf32>
    %198 = tpu.matmul %154, %197, %cst_116 {dimension_numbers = #tpu.dot_dimension_numbers<[1], [0], [0], [1], [0, 0, 1, 1], [], []>} : vector<8x128xbf16>, vector<128x512xbf16>, vector<8x512xf32> -> vector<8x512xf32>
    %199 = arith.addf %104, %198 : vector<8x512xf32>
    %cst_117 = arith.constant 0.000000e+00 : f32
    %200 = vector.broadcast %cst_117 : f32 to vector<8x512xf32>
    %201 = arith.maximumf %199, %200 : vector<8x512xf32>
    %c0_118 = arith.constant 0 : index
    %c0_119 = arith.constant 0 : index
    %202 = vector.load %arg5[%c0_118, %c0_119] : memref<8x512xf32, #tpu.memory_space<vmem>>, vector<8x512xf32>
    tpu.vector_store %arg5[%c0_118, %c0_119], %201 {strides = array<i32>} : memref<8x512xf32, #tpu.memory_space<vmem>>, vector<8x512xf32>,
    return
  }
  func.func @transform_0(%arg0: i32) -> (i32, i32) {
    %c0_i32 = arith.constant 0 : i32
    %c0_i32_0 = arith.constant 0 : i32
    return %c0_i32, %arg0 : i32, i32
  }
  func.func @transform_1(%arg0: i32) -> (i32, i32, i32) {
    %c0_i32 = arith.constant 0 : i32
    %c0_i32_0 = arith.constant 0 : i32
    %c0_i32_1 = arith.constant 0 : i32
    %c0_i32_2 = arith.constant 0 : i32
    return %c0_i32, %c0_i32_0, %c0_i32_1 : i32, i32, i32
  }
  func.func @transform_2(%arg0: i32) -> (i32, i32, i32) {
    %c0_i32 = arith.constant 0 : i32
    %c0_i32_0 = arith.constant 0 : i32
    %c0_i32_1 = arith.constant 0 : i32
    %c0_i32_2 = arith.constant 0 : i32
    return %c0_i32, %c0_i32_0, %c0_i32_1 : i32, i32, i32
  }
  func.func @transform_3(%arg0: i32) -> (i32, i32) {
    %c0_i32 = arith.constant 0 : i32
    %c0_i32_0 = arith.constant 0 : i32
    %c0_i32_1 = arith.constant 0 : i32
    return %c0_i32, %c0_i32_0 : i32, i32
  }
  func.func @transform_4(%arg0: i32) -> (i32, i32) {
    %c0_i32 = arith.constant 0 : i32
    %c0_i32_0 = arith.constant 0 : i32
    return %c0_i32, %arg0 : i32, i32
  }
}

</mosaic_0001>

<llo_original>
// kernel: tpu_custom_call.1
$region0: #{tpu_custom_call.1}
  #allocation0 [shape = 'u32[]', space=smem, size = 0x4, offset = 0x4, fixed_abs, tag = 'smem constant byte address 0x4 - core index']
  #allocation1 [shape = 'u32[144,128]{1,0:T(1,128)}', space=vmem, size = 0x12000, scoped, tag = 'internal scratch']
  #allocation2 [shape = 'f32[128,512]{1,0:T(8,128)}', space=vmem, size = 0x40000, scoped, tag = 'scratch operand']
  %s0 = inlined_call_operand.hbm [shape: f32[8,1024], index: 0, kind: input, shape index: {}]
  %s1 = inlined_call_operand.hbm [shape: bf16[2,8,128], index: 1, kind: input, shape index: {}]
  %s2 = inlined_call_operand.hbm [shape: bf16[2,8,128], index: 2, kind: input, shape index: {}]
  %s3 = inlined_call_operand.hbm [shape: f32[9,512], index: 3, kind: input, shape index: {}]
  %s4 = inlined_call_operand.hbm [shape: f32[8,1024], index: 4, kind: output, shape index: {}]
  %s5 = sld [smem:[#allocation0]]
  $region65: #{tpu_custom_call.1} parent=0
    _
  %s7 = ssub.s32 1, %s5
  %s8 = scalar_select 0, %s7, %s5
  $region1: #{tpu_custom_call.1} parent=0
    #allocation3 [shape = 'u8[32768]{0}', space=vmem, size = 0x8000, scoped, tag = 'input window, operand 0']
    #allocation4 [shape = 's32[2]{0}', space=sflag, size = 0x8, scoped, tag = 'scoped memory for tpu_custom_call.1']
    #allocation5 [shape = 's32[2]{0}', space=sflag, size = 0x8, scoped, tag = 'scoped memory for tpu_custom_call.1']
    #allocation6 [shape = 'u8[4096]{0}', space=vmem, size = 0x1000, scoped, tag = 'input window, operand 1, single buffered']
    #allocation7 [shape = 's32[1]{0}', space=sflag, size = 0x4, scoped, tag = 'scoped memory for tpu_custom_call.1']
    #allocation8 [shape = 'u8[4096]{0}', space=vmem, size = 0x1000, scoped, tag = 'input window, operand 2, single buffered']
    #allocation9 [shape = 'u8[32768]{0}', space=vmem, size = 0x8000, scoped, tag = 'input window, operand 3, single buffered']
    #allocation10 [shape = 's32[1]{0}', space=sflag, size = 0x4, scoped, tag = 'scoped memory for tpu_custom_call.1']
    #allocation11 [shape = 'u8[32768]{0}', space=vmem, size = 0x8000, scoped, tag = 'output window, operand 0']
    %9 = vsyncpa [#allocation4], 0
    %s10 = scalar_lea.sflag [#allocation4], 1
    %11 = vsyncpa %s10, 0
    %12 = vsyncpa [#allocation7], 0
    %13 = vsyncpa [#allocation10], 0
    %14 = vsyncpa [#allocation5], 0
    %s15 = scalar_lea.sflag [#allocation5], 1
    %16 = vsyncpa %s15, 0
    loop: start=0, step=1, limit=4
    $region2: #{tpu_custom_call.1} parent=1 // loop_pre_header
      _
    $region3: #{tpu_custom_call.1} parent=1 // loop_header
      %s18 = sphi 0, %s22
      %p19 = scmp.ge.s32.totalorder %s18, 4
      %s28 = sphi 0, %s30
      %s31 = sphi 0, %s28
      %s32 = sphi 0, %s31
      %s48 = sphi 0, %s32
      %s52 = sphi 0, %s52
      %s54 = sphi 0, %s52
      %s55 = sphi 0, %s54
      %s69 = sphi 0, %s55
      %s73 = sphi 0, %s73
      %s75 = sphi 0, %s73
      %s76 = sphi 0, %s75
      %s90 = sphi 0, %s76
      %s94 = sphi 0, %s94
      %s96 = sphi 0, %s94
      %s97 = sphi 0, %s96
      %s111 = sphi 0, %s97
      %s117 = sphi 0, %s119
      %s120 = sphi 0, %s117
      %s121 = sphi 0, %s120
      %s137 = sphi 0, %s121
    $region4: #{tpu_custom_call.1} parent=1 // loop_header_branch
      %21 = sbr.rel (%p19) target = $region8
    $region5: #{tpu_custom_call.1} parent=1 // loop_body
      %s23 = ssub.s32 %s18, 1
      %s24 = ssub.s32 %s18, 2
      %s25 = sadd.s32 %s18, 1
      %s26 = ssub.s32 %s18, %s25
      %p27 = scmp.eq.s32.totalorder %s26, 0
      %s29 = sadd.s32 %s28, 1
      %s30 = scalar_select %p27, %s28, %s29
      %p33 = pneg %p27
      %p34 = scmp.eq.s32.totalorder %s18, 1
      %p35 = por %p33, %p34
      %p36 = scmp.ne.s32.totalorder %s28, %s31
      %p37 = scmp.eq.s32.totalorder %s18, 0
      %p38 = por %p36, %p37
      %p39 = scmp.ne.s32.totalorder %s28, %s31
      %p40 = scmp.eq.s32.totalorder %s23, 1
      %p41 = por %p39, %p40
      %p42 = scmp.ne.s32.totalorder %s31, %s32
      %p43 = scmp.eq.s32.totalorder %s23, 0
      %p44 = por %p42, %p43
      %p45 = scmp.ne.s32.totalorder %s31, %s32
      %p46 = scmp.eq.s32.totalorder %s24, 1
      %p47 = por %p45, %p46
      %p49 = scmp.ne.s32.totalorder %s32, %s48
      %p50 = scmp.eq.s32.totalorder %s24, 0
      %p51 = por %p49, %p50
      %s53 = sadd.s32 %s52, 1
      %p56 = scmp.eq.s32.totalorder %s18, 1
      %p57 = scmp.ne.s32.totalorder %s52, %s54
      %p58 = scmp.eq.s32.totalorder %s18, 0
      %p59 = por %p57, %p58
      %p60 = scmp.ne.s32.totalorder %s52, %s54
      %p61 = scmp.eq.s32.totalorder %s23, 1
      %p62 = por %p60, %p61
      %p63 = scmp.ne.s32.totalorder %s54, %s55
      %p64 = scmp.eq.s32.totalorder %s23, 0
      %p65 = por %p63, %p64
      %p66 = scmp.ne.s32.totalorder %s54, %s55
      %p67 = scmp.eq.s32.totalorder %s24, 1
      %p68 = por %p66, %p67
      %p70 = scmp.ne.s32.totalorder %s55, %s69
      %p71 = scmp.eq.s32.totalorder %s24, 0
      %p72 = por %p70, %p71
      %s74 = sadd.s32 %s73, 1
      %p77 = scmp.eq.s32.totalorder %s18, 1
      %p78 = scmp.ne.s32.totalorder %s73, %s75
      %p79 = scmp.eq.s32.totalorder %s18, 0
      %p80 = por %p78, %p79
      %p81 = scmp.ne.s32.totalorder %s73, %s75
      %p82 = scmp.eq.s32.totalorder %s23, 1
      %p83 = por %p81, %p82
      %p84 = scmp.ne.s32.totalorder %s75, %s76
      %p85 = scmp.eq.s32.totalorder %s23, 0
      %p86 = por %p84, %p85
      %p87 = scmp.ne.s32.totalorder %s75, %s76
      %p88 = scmp.eq.s32.totalorder %s24, 1
      %p89 = por %p87, %p88
      %p91 = scmp.ne.s32.totalorder %s76, %s90
      %p92 = scmp.eq.s32.totalorder %s24, 0
      %p93 = por %p91, %p92
      %s95 = sadd.s32 %s94, 1
      %p98 = scmp.eq.s32.totalorder %s18, 1
      %p99 = scmp.ne.s32.totalorder %s94, %s96
      %p100 = scmp.eq.s32.totalorder %s18, 0
      %p101 = por %p99, %p100
      %p102 = scmp.ne.s32.totalorder %s94, %s96
      %p103 = scmp.eq.s32.totalorder %s23, 1
      %p104 = por %p102, %p103
      %p105 = scmp.ne.s32.totalorder %s96, %s97
      %p106 = scmp.eq.s32.totalorder %s23, 0
      %p107 = por %p105, %p106
      %p108 = scmp.ne.s32.totalorder %s96, %s97
      %p109 = scmp.eq.s32.totalorder %s24, 1
      %p110 = por %p108, %p109
      %p112 = scmp.ne.s32.totalorder %s97, %s111
      %p113 = scmp.eq.s32.totalorder %s24, 0
      %p114 = por %p112, %p113
      %s115 = ssub.s32 %s18, %s25
      %p116 = scmp.eq.s32.totalorder %s115, 0
      %s118 = sadd.s32 %s117, 1
      %s119 = scalar_select %p116, %s117, %s118
      %p122 = pneg %p116
      %p123 = scmp.eq.s32.totalorder %s18, 1
      %p124 = por %p122, %p123
      %p125 = scmp.ne.s32.totalorder %s117, %s120
      %p126 = scmp.eq.s32.totalorder %s18, 0
      %p127 = por %p125, %p126
      %p128 = scmp.ne.s32.totalorder %s117, %s120
      %p129 = scmp.eq.s32.totalorder %s23, 1
      %p130 = por %p128, %p129
      %p131 = scmp.ne.s32.totalorder %s120, %s121
      %p132 = scmp.eq.s32.totalorder %s23, 0
      %p133 = por %p131, %p132
      %p134 = scmp.ne.s32.totalorder %s120, %s121
      %p135 = scmp.eq.s32.totalorder %s24, 1
      %p136 = por %p134, %p135
      %p138 = scmp.ne.s32.totalorder %s121, %s137
      %p139 = scmp.eq.s32.totalorder %s24, 0
      %p140 = por %p138, %p139
      %p141 = scmp.le.s32.totalorder 1, %s18
      %p142 = scmp.lt.s32.totalorder %s18, 3
      %p143 = pnand %p141, %p142
      %p144 = pneg %p143
      // Predicated region
      $region9: #{tpu_custom_call.1} parent=5 // pred_check
        _
      $region10: #{tpu_custom_call.1} parent=5 // pred_check_branch
        %146 = sbr.rel (%p143) target = $region12
      $region11: #{tpu_custom_call.1} parent=5 // pred_region
        %s147 = ssub.s32 %s18, 1
        // Predicated region
        $region13: #{tpu_custom_call.1} parent=11 // pred_check
          %p148 = pneg %p65
        $region14: #{tpu_custom_call.1} parent=11 // pred_check_branch
          %150 = sbr.rel (%p148) target = $region16
        $region15: #{tpu_custom_call.1} parent=11 // pred_region
          %s152 = ssub.s32 128, 128
          %153 = vsyncadd [#allocation7], %s152
          %s154 = sshll.u32 [#allocation6], 4
          %s155 = int_to_ptr.vmem [resolvable:$true] %s154
          %160 = dma.hbm_to_vmem [thread:$0]  %s1, 128, %s155, [#allocation7], 64, 64, 4
        $region16: #{tpu_custom_call.1} parent=11 // pred_fallthru
          _
        // Predicated region
        $region17: #{tpu_custom_call.1} parent=11 // pred_check
          %p161 = pneg %p86
        $region18: #{tpu_custom_call.1} parent=11 // pred_check_branch
          %163 = sbr.rel (%p161) target = $region20
        $region19: #{tpu_custom_call.1} parent=11 // pred_region
          %s165 = ssub.s32 128, 128
          %166 = vsyncadd [#allocation7], %s165
          %s167 = sshll.u32 [#allocation8], 4
          %s168 = int_to_ptr.vmem [resolvable:$true] %s167
          %173 = dma.hbm_to_vmem [thread:$0]  %s2, 128, %s168, [#allocation7], 64, 64, 4
        $region20: #{tpu_custom_call.1} parent=11 // pred_fallthru
          _
        // Predicated region
        $region21: #{tpu_custom_call.1} parent=11 // pred_check
          %p174 = pneg %p107
        $region22: #{tpu_custom_call.1} parent=11 // pred_check_branch
          %176 = sbr.rel (%p174) target = $region24
        $region23: #{tpu_custom_call.1} parent=11 // pred_region
          %s178 = ssub.s32 1024, 1024
          %179 = vsyncadd [#allocation10], %s178
          %s180 = sshll.u32 [#allocation9], 4
          %s181 = int_to_ptr.vmem [resolvable:$true] %s180
          %186 = dma.hbm_to_vmem [thread:$0]  %s3, 1024, %s181, [#allocation10], 512, 512, 32
        $region24: #{tpu_custom_call.1} parent=11 // pred_fallthru
          _
      $region12: #{tpu_custom_call.1} parent=5 // pred_fallthru
        _
      %p187 = scmp.lt.s32.totalorder %s18, 2
      // Predicated region
      $region25: #{tpu_custom_call.1} parent=5 // pred_check
        %p188 = pneg %p187
      $region26: #{tpu_custom_call.1} parent=5 // pred_check_branch
        %190 = sbr.rel (%p188) target = $region28
      $region27: #{tpu_custom_call.1} parent=5 // pred_region
        // Predicated region
        $region29: #{tpu_custom_call.1} parent=27 // pred_check
          %p191 = pneg %p38
        $region30: #{tpu_custom_call.1} parent=27 // pred_check_branch
          %193 = sbr.rel (%p191) target = $region32
        $region31: #{tpu_custom_call.1} parent=27 // pred_region
          %s194 = sand.u32 %s28, 1
          %s195 = scalar_lea.sflag [#allocation4], %s194
          %s196 = sand.u32 %s28, 1
          %s197 = smul.addr %s196, 32
          %s198 = scalar_lea.vmem [#allocation3], %s197
          %s199 = smul.u32 4, %s18
          %s201 = ssub.s32 512, 512
          %202 = vsyncadd %s195, %s201
          %s203 = smul.addr %s199, 128
          %s204 = scalar_lea.hbm %s0, %s203
          %s206 = sshll.u32 %s198, 4
          %s207 = int_to_ptr.vmem [resolvable:$true] %s206
          %209 = dma.hbm_to_vmem [thread:$0]  %s204, 512, %s207, %s195
        $region32: #{tpu_custom_call.1} parent=27 // pred_fallthru
          _
      $region28: #{tpu_custom_call.1} parent=5 // pred_fallthru
        _
      %p210 = scmp.le.s32.totalorder 1, %s18
      %p211 = scmp.lt.s32.totalorder %s18, 3
      %p212 = pnand %p210, %p211
      %p213 = pneg %p212
      // Predicated region
      $region33: #{tpu_custom_call.1} parent=5 // pred_check
        _
      $region34: #{tpu_custom_call.1} parent=5 // pred_check_branch
        %215 = sbr.rel (%p212) target = $region36
      $region35: #{tpu_custom_call.1} parent=5 // pred_region
        %s216 = ssub.s32 %s18, 1
        %s217 = sand.u32 %s31, 1
        %s218 = scalar_lea.sflag [#allocation4], %s217
        %s219 = sand.u32 %s31, 1
        %s220 = smul.addr %s219, 32
        %s221 = scalar_lea.vmem [#allocation3], %s220
        // Predicated region
        $region37: #{tpu_custom_call.1} parent=35 // pred_check
          %p222 = pneg %p44
        $region38: #{tpu_custom_call.1} parent=35 // pred_check_branch
          %224 = sbr.rel (%p222) target = $region40
        $region39: #{tpu_custom_call.1} parent=35 // pred_region
          %225 = dma.done %s218, 512
        $region40: #{tpu_custom_call.1} parent=35 // pred_fallthru
          _
        // Predicated region
        $region41: #{tpu_custom_call.1} parent=35 // pred_check
          %p226 = pneg %p65
        $region42: #{tpu_custom_call.1} parent=35 // pred_check_branch
          %228 = sbr.rel (%p226) target = $region44
        $region43: #{tpu_custom_call.1} parent=35 // pred_region
          %229 = dma.done [#allocation7], 128
        $region44: #{tpu_custom_call.1} parent=35 // pred_fallthru
          _
        // Predicated region
        $region45: #{tpu_custom_call.1} parent=35 // pred_check
          %p230 = pneg %p86
        $region46: #{tpu_custom_call.1} parent=35 // pred_check_branch
          %232 = sbr.rel (%p230) target = $region48
        $region47: #{tpu_custom_call.1} parent=35 // pred_region
          %233 = dma.done [#allocation7], 128
        $region48: #{tpu_custom_call.1} parent=35 // pred_fallthru
          _
        // Predicated region
        $region49: #{tpu_custom_call.1} parent=35 // pred_check
          %p234 = pneg %p107
        $region50: #{tpu_custom_call.1} parent=35 // pred_check_branch
          %236 = sbr.rel (%p234) target = $region52
        $region51: #{tpu_custom_call.1} parent=35 // pred_region
          %237 = dma.done [#allocation10], 1024
        $region52: #{tpu_custom_call.1} parent=35 // pred_fallthru
          _
        %s238 = sand.u32 %s31, 1
        %s239 = scalar_lea.sflag [#allocation4], %s238
        %s240 = sand.u32 %s31, 1
        %s241 = smul.addr %s240, 32
        %s242 = scalar_lea.vmem [#allocation3], %s241
        %p243 = pneg %p44
        %p244 = pneg %p41
        %p245 = pneg %p65
        %p246 = pneg %p62
        %p247 = pneg %p86
        %p248 = pneg %p83
        %p249 = pneg %p107
        %p250 = pneg %p104
        %p251 = pneg %p133
        %p252 = pneg %p130
        %s253 = sand.u32 %s120, 1
        %s254 = scalar_lea.sflag [#allocation5], %s253
        %s255 = sand.u32 %s120, 1
        %s256 = smul.addr %s255, 32
        %s257 = scalar_lea.vmem [#allocation11], %s256
        %s258 = smul.u32 4, %s23
        %s259 = smul.u32 4, %s23
        %v261 = vlaneseq
        %v262 = vshrl.u32 %v261, 7
        %v263 = vadd.s32 %v262, 8
        %v264 = vadd.s32 %v262, 16
        %v265 = vadd.s32 %v262, 24
        %v266 = vadd.s32 %v262, 32
        %v267 = vadd.s32 %v262, 40
        %v268 = vadd.s32 %v262, 48
        %vm269 = vcmp.eq.s32.totalorder %v262, 0
        %vm270 = vcmp.eq.s32.totalorder %v263, 0
        %vm271 = vcmp.eq.s32.totalorder %v264, 0
        %vm272 = vcmp.eq.s32.totalorder %v265, 0
        %vm273 = vcmp.eq.s32.totalorder %v266, 0
        %vm274 = vcmp.eq.s32.totalorder %v267, 0
        %vm275 = vcmp.eq.s32.totalorder %v268, 0
        %v276 = vsel %vm269, 1, 0
        %v277 = vsel %vm270, 1, 0
        %v278 = vsel %vm271, 1, 0
        %v279 = vsel %vm272, 1, 0
        %v280 = vsel %vm273, 1, 0
        %v281 = vsel %vm274, 1, 0
        %v282 = vsel %vm275, 1, 0
        %v283 = vcvt.s32.f32 %v276
        %v284 = vcvt.s32.f32 %v277
        %v285 = vcvt.s32.f32 %v278
        %v286 = vcvt.s32.f32 %v279
        %v287 = vcvt.s32.f32 %v280
        %v288 = vcvt.s32.f32 %v281
        %v289 = vcvt.s32.f32 %v282
        %290 = vst [vmem:[#allocation2 + $0x120] sm:$0xff] %v283
        %291 = vst [vmem:[#allocation2 + $0x128] sm:$0xff] %v283
        %292 = vst [vmem:[#allocation2 + $0x130] sm:$0xff] %v283
        %293 = vst [vmem:[#allocation2 + $0x138] sm:$0xff] %v283
        %294 = vst [vmem:[#allocation2 + $0x140] sm:$0xff] %v284
        %295 = vst [vmem:[#allocation2 + $0x148] sm:$0xff] %v284
        %296 = vst [vmem:[#allocation2 + $0x150] sm:$0xff] %v284
        %297 = vst [vmem:[#allocation2 + $0x158] sm:$0xff] %v284
        %298 = vst [vmem:[#allocation2 + $0x160] sm:$0xff] %v285
        %299 = vst [vmem:[#allocation2 + $0x168] sm:$0xff] %v285
        %300 = vst [vmem:[#allocation2 + $0x170] sm:$0xff] %v285
        %301 = vst [vmem:[#allocation2 + $0x178] sm:$0xff] %v285
        %302 = vst [vmem:[#allocation2 + $0x180] sm:$0xff] %v286
        %303 = vst [vmem:[#allocation2 + $0x188] sm:$0xff] %v286
        %304 = vst [vmem:[#allocation2 + $0x190] sm:$0xff] %v286
        %305 = vst [vmem:[#allocation2 + $0x198] sm:$0xff] %v286
        %306 = vst [vmem:[#allocation2 + $0x1a0] sm:$0xff] %v287
        %307 = vst [vmem:[#allocation2 + $0x1a8] sm:$0xff] %v287
        %308 = vst [vmem:[#allocation2 + $0x1b0] sm:$0xff] %v287
        %309 = vst [vmem:[#allocation2 + $0x1b8] sm:$0xff] %v287
        %310 = vst [vmem:[#allocation2 + $0x1c0] sm:$0xff] %v288
        %311 = vst [vmem:[#allocation2 + $0x1c8] sm:$0xff] %v288
        %312 = vst [vmem:[#allocation2 + $0x1d0] sm:$0xff] %v288
        %313 = vst [vmem:[#allocation2 + $0x1d8] sm:$0xff] %v288
        %314 = vst [vmem:[#allocation2 + $0x1e0] sm:$0xff] %v289
        %315 = vst [vmem:[#allocation2 + $0x1e8] sm:$0xff] %v289
        %316 = vst [vmem:[#allocation2 + $0x1f0] sm:$0xff] %v289
        %317 = vst [vmem:[#allocation2 + $0x1f8] sm:$0xff] %v289
        %v318 = vld [vmem:[#allocation9] sm:$0xff]
        %v319 = vld [vmem:[#allocation9 + $0x8] sm:$0xff]
        %v320 = vld [vmem:[#allocation9 + $0x10] sm:$0xff]
        %v321 = vld [vmem:[#allocation9 + $0x18] sm:$0xff]
        %v322 = vld [vmem:[#allocation9 + $0x20] sm:$0x1]
        %v323 = vld [vmem:[#allocation9 + $0x28] sm:$0x1]
        %v324 = vld [vmem:[#allocation9 + $0x30] sm:$0x1]
        %v325 = vld [vmem:[#allocation9 + $0x38] sm:$0x1]
        %v326 = vld [vmem:[%s221] sm:$0xff]
        %v327 = vld [vmem:[%s221 + $0x8] sm:$0xff]
        %v328 = vld [vmem:[%s221 + $0x10] sm:$0xff]
        %v329 = vld [vmem:[%s221 + $0x18] sm:$0xff]
        %v330 = vld [vmem:[#allocation6] sm:$0xf]
        %331 = vrot.lane.b32.xlu0 %v326, 17
        %v332 = vpop.permute.xlu0 %331
        %333 = vrot.lane.b32.xlu0 %v327, 17
        %v334 = vpop.permute.xlu0 %333
        %335 = vrot.lane.b32.xlu0 %v328, 17
        %v336 = vpop.permute.xlu0 %335
        %337 = vrot.lane.b32.xlu0 %v329, 17
        %v338 = vpop.permute.xlu0 %337
        %v339 = vlaneseq
        %v340 = vand.u32 %v339, 127
        %vm341 = vcmp.lt.s32.totalorder %v340, 17
        %v342 = vsel %vm341, %v336, %v338
        %v343 = vsel %vm341, %v334, %v336
        %v344 = vsel %vm341, %v332, %v334
        %v345 = vsel %vm341, %v338, %v332
        %v346 = vlaneseq
        %v347 = vshrl.u32 %v346, 7
        %v348 = vsub.s32 0, %v347
        %v349 = vrot.slane %v318, %v348
        %v350 = vlaneseq
        %v351 = vshrl.u32 %v350, 7
        %v352 = vsub.s32 0, %v351
        %v353 = vrot.slane %v319, %v352
        %v354 = vlaneseq
        %v355 = vshrl.u32 %v354, 7
        %v356 = vsub.s32 0, %v355
        %v357 = vrot.slane %v320, %v356
        %v358 = vlaneseq
        %v359 = vshrl.u32 %v358, 7
        %v360 = vsub.s32 0, %v359
        %v361 = vrot.slane %v321, %v360
        %v362 = vmul.f32 %v345, %v349
        %v363 = vmul.f32 %v344, %v353
        %v364 = vmul.f32 %v343, %v357
        %v365 = vmul.f32 %v342, %v361
        %366 = vst [vmem:[#allocation2] sm:$0xff] %v362
        %367 = vst [vmem:[#allocation2 + $0x8] sm:$0xff] %v363
        %368 = vst [vmem:[#allocation2 + $0x10] sm:$0xff] %v364
        %369 = vst [vmem:[#allocation2 + $0x18] sm:$0xff] %v365
        %370 = vrot.lane.b32.xlu0 %v326, 16
        %v371 = vpop.permute.xlu0 %370
        %372 = vrot.lane.b32.xlu0 %v327, 16
        %v373 = vpop.permute.xlu0 %372
        %374 = vrot.lane.b32.xlu0 %v328, 16
        %v375 = vpop.permute.xlu0 %374
        %376 = vrot.lane.b32.xlu0 %v329, 16
        %v377 = vpop.permute.xlu0 %376
        %vm378 = vcmp.lt.s32.totalorder %v340, 16
        %v379 = vsel %vm378, %v375, %v377
        %v380 = vsel %vm378, %v373, %v375
        %v381 = vsel %vm378, %v371, %v373
        %v382 = vsel %vm378, %v377, %v371
        %v383 = vlaneseq
        %v384 = vshrl.u32 %v383, 7
        %v385 = vsub.s32 1, %v384
        %v386 = vrot.slane %v318, %v385
        %v387 = vlaneseq
        %v388 = vshrl.u32 %v387, 7
        %v389 = vsub.s32 1, %v388
        %v390 = vrot.slane %v319, %v389
        %v391 = vlaneseq
        %v392 = vshrl.u32 %v391, 7
        %v393 = vsub.s32 1, %v392
        %v394 = vrot.slane %v320, %v393
        %v395 = vlaneseq
        %v396 = vshrl.u32 %v395, 7
        %v397 = vsub.s32 1, %v396
        %v398 = vrot.slane %v321, %v397
        %v399 = vmul.f32 %v382, %v386
        %v400 = vmul.f32 %v381, %v390
        %v401 = vmul.f32 %v380, %v394
        %v402 = vmul.f32 %v379, %v398
        %403 = vst [vmem:[#allocation2 + $0x20] sm:$0xff] %v399
        %404 = vst [vmem:[#allocation2 + $0x28] sm:$0xff] %v400
        %405 = vst [vmem:[#allocation2 + $0x30] sm:$0xff] %v401
        %406 = vst [vmem:[#allocation2 + $0x38] sm:$0xff] %v402
        %407 = vrot.lane.b32.xlu0 %v326, 15
        %v408 = vpop.permute.xlu0 %407
        %409 = vrot.lane.b32.xlu0 %v327, 15
        %v410 = vpop.permute.xlu0 %409
        %411 = vrot.lane.b32.xlu0 %v328, 15
        %v412 = vpop.permute.xlu0 %411
        %413 = vrot.lane.b32.xlu0 %v329, 15
        %v414 = vpop.permute.xlu0 %413
        %vm415 = vcmp.lt.s32.totalorder %v340, 15
        %v416 = vsel %vm415, %v412, %v414
        %v417 = vsel %vm415, %v410, %v412
        %v418 = vsel %vm415, %v408, %v410
        %v419 = vsel %vm415, %v414, %v408
        %v420 = vlaneseq
        %v421 = vshrl.u32 %v420, 7
        %v422 = vsub.s32 2, %v421
        %v423 = vrot.slane %v318, %v422
        %v424 = vlaneseq
        %v425 = vshrl.u32 %v424, 7
        %v426 = vsub.s32 2, %v425
        %v427 = vrot.slane %v319, %v426
        %v428 = vlaneseq
        %v429 = vshrl.u32 %v428, 7
        %v430 = vsub.s32 2, %v429
        %v431 = vrot.slane %v320, %v430
        %v432 = vlaneseq
        %v433 = vshrl.u32 %v432, 7
        %v434 = vsub.s32 2, %v433
        %v435 = vrot.slane %v321, %v434
        %v436 = vmul.f32 %v419, %v423
        %v437 = vmul.f32 %v418, %v427
        %v438 = vmul.f32 %v417, %v431
        %v439 = vmul.f32 %v416, %v435
        %440 = vst [vmem:[#allocation2 + $0x40] sm:$0xff] %v436
        %441 = vst [vmem:[#allocation2 + $0x48] sm:$0xff] %v437
        %442 = vst [vmem:[#allocation2 + $0x50] sm:$0xff] %v438
        %443 = vst [vmem:[#allocation2 + $0x58] sm:$0xff] %v439
        %444 = vrot.lane.b32.xlu0 %v326, 1
        %v445 = vpop.permute.xlu0 %444
        %446 = vrot.lane.b32.xlu0 %v327, 1
        %v447 = vpop.permute.xlu0 %446
        %448 = vrot.lane.b32.xlu0 %v328, 1
        %v449 = vpop.permute.xlu0 %448
        %450 = vrot.lane.b32.xlu0 %v329, 1
        %v451 = vpop.permute.xlu0 %450
        %vm452 = vcmp.lt.s32.totalorder %v340, 1
        %v453 = vsel %vm452, %v449, %v451
        %v454 = vsel %vm452, %v447, %v449
        %v455 = vsel %vm452, %v445, %v447
        %v456 = vsel %vm452, %v451, %v445
        %v457 = vlaneseq
        %v458 = vshrl.u32 %v457, 7
        %v459 = vsub.s32 3, %v458
        %v460 = vrot.slane %v318, %v459
        %v461 = vlaneseq
        %v462 = vshrl.u32 %v461, 7
        %v463 = vsub.s32 3, %v462
        %v464 = vrot.slane %v319, %v463
        %v465 = vlaneseq
        %v466 = vshrl.u32 %v465, 7
        %v467 = vsub.s32 3, %v466
        %v468 = vrot.slane %v320, %v467
        %v469 = vlaneseq
        %v470 = vshrl.u32 %v469, 7
        %v471 = vsub.s32 3, %v470
        %v472 = vrot.slane %v321, %v471
        %v473 = vmul.f32 %v456, %v460
        %v474 = vmul.f32 %v455, %v464
        %v475 = vmul.f32 %v454, %v468
        %v476 = vmul.f32 %v453, %v472
        %477 = vst [vmem:[#allocation2 + $0x60] sm:$0xff] %v473
        %478 = vst [vmem:[#allocation2 + $0x68] sm:$0xff] %v474
        %479 = vst [vmem:[#allocation2 + $0x70] sm:$0xff] %v475
        %480 = vst [vmem:[#allocation2 + $0x78] sm:$0xff] %v476
        %481 = vst [vmem:[#allocation2 + $0x80] sm:$0xff] %v326
        %482 = vst [vmem:[#allocation2 + $0x88] sm:$0xff] %v327
        %483 = vst [vmem:[#allocation2 + $0x90] sm:$0xff] %v328
        %484 = vst [vmem:[#allocation2 + $0x98] sm:$0xff] %v329
        %485 = vrot.lane.b32.xlu0 %v326, 127
        %v486 = vpop.permute.xlu0 %485
        %487 = vrot.lane.b32.xlu0 %v327, 127
        %v488 = vpop.permute.xlu0 %487
        %489 = vrot.lane.b32.xlu0 %v328, 127
        %v490 = vpop.permute.xlu0 %489
        %491 = vrot.lane.b32.xlu0 %v329, 127
        %v492 = vpop.permute.xlu0 %491
        %vm493 = vcmp.lt.s32.totalorder %v340, 127
        %v494 = vsel %vm493, %v490, %v492
        %v495 = vsel %vm493, %v488, %v490
        %v496 = vsel %vm493, %v486, %v488
        %v497 = vsel %vm493, %v492, %v486
        %v498 = vlaneseq
        %v499 = vshrl.u32 %v498, 7
        %v500 = vsub.s32 5, %v499
        %v501 = vrot.slane %v318, %v500
        %v502 = vlaneseq
        %v503 = vshrl.u32 %v502, 7
        %v504 = vsub.s32 5, %v503
        %v505 = vrot.slane %v319, %v504
        %v506 = vlaneseq
        %v507 = vshrl.u32 %v506, 7
        %v508 = vsub.s32 5, %v507
        %v509 = vrot.slane %v320, %v508
        %v510 = vlaneseq
        %v511 = vshrl.u32 %v510, 7
        %v512 = vsub.s32 5, %v511
        %v513 = vrot.slane %v321, %v512
        %v514 = vmul.f32 %v496, %v501
        %v515 = vmul.f32 %v495, %v505
        %v516 = vmul.f32 %v494, %v509
        %v517 = vmul.f32 %v497, %v513
        %518 = vst [vmem:[#allocation2 + $0xa0] sm:$0xff] %v514
        %519 = vst [vmem:[#allocation2 + $0xa8] sm:$0xff] %v515
        %520 = vst [vmem:[#allocation2 + $0xb0] sm:$0xff] %v516
        %521 = vst [vmem:[#allocation2 + $0xb8] sm:$0xff] %v517
        %522 = vrot.lane.b32.xlu0 %v326, 113
        %v523 = vpop.permute.xlu0 %522
        %524 = vrot.lane.b32.xlu0 %v327, 113
        %v525 = vpop.permute.xlu0 %524
        %526 = vrot.lane.b32.xlu0 %v328, 113
        %v527 = vpop.permute.xlu0 %526
        %528 = vrot.lane.b32.xlu0 %v329, 113
        %v529 = vpop.permute.xlu0 %528
        %vm530 = vcmp.lt.s32.totalorder %v340, 113
        %v531 = vsel %vm530, %v527, %v529
        %v532 = vsel %vm530, %v525, %v527
        %v533 = vsel %vm530, %v523, %v525
        %v534 = vsel %vm530, %v529, %v523
        %v535 = vlaneseq
        %v536 = vshrl.u32 %v535, 7
        %v537 = vsub.s32 6, %v536
        %v538 = vrot.slane %v318, %v537
        %v539 = vlaneseq
        %v540 = vshrl.u32 %v539, 7
        %v541 = vsub.s32 6, %v540
        %v542 = vrot.slane %v319, %v541
        %v543 = vlaneseq
        %v544 = vshrl.u32 %v543, 7
        %v545 = vsub.s32 6, %v544
        %v546 = vrot.slane %v320, %v545
        %v547 = vlaneseq
        %v548 = vshrl.u32 %v547, 7
        %v549 = vsub.s32 6, %v548
        %v550 = vrot.slane %v321, %v549
        %v551 = vmul.f32 %v533, %v538
        %v552 = vmul.f32 %v532, %v542
        %v553 = vmul.f32 %v531, %v546
        %v554 = vmul.f32 %v534, %v550
        %555 = vst [vmem:[#allocation2 + $0xc0] sm:$0xff] %v551
        %556 = vst [vmem:[#allocation2 + $0xc8] sm:$0xff] %v552
        %557 = vst [vmem:[#allocation2 + $0xd0] sm:$0xff] %v553
        %558 = vst [vmem:[#allocation2 + $0xd8] sm:$0xff] %v554
        %559 = vrot.lane.b32.xlu0 %v326, 112
        %v560 = vpop.permute.xlu0 %559
        %561 = vrot.lane.b32.xlu0 %v327, 112
        %v562 = vpop.permute.xlu0 %561
        %563 = vrot.lane.b32.xlu0 %v328, 112
        %v564 = vpop.permute.xlu0 %563
        %565 = vrot.lane.b32.xlu0 %v329, 112
        %v566 = vpop.permute.xlu0 %565
        %vm567 = vcmp.lt.s32.totalorder %v340, 112
        %v568 = vsel %vm567, %v564, %v566
        %v569 = vsel %vm567, %v562, %v564
        %v570 = vsel %vm567, %v560, %v562
        %v571 = vsel %vm567, %v566, %v560
        %v572 = vlaneseq
        %v573 = vshrl.u32 %v572, 7
        %v574 = vsub.s32 7, %v573
        %v575 = vrot.slane %v318, %v574
        %v576 = vlaneseq
        %v577 = vshrl.u32 %v576, 7
        %v578 = vsub.s32 7, %v577
        %v579 = vrot.slane %v319, %v578
        %v580 = vlaneseq
        %v581 = vshrl.u32 %v580, 7
        %v582 = vsub.s32 7, %v581
        %v583 = vrot.slane %v320, %v582
        %v584 = vlaneseq
        %v585 = vshrl.u32 %v584, 7
        %v586 = vsub.s32 7, %v585
        %v587 = vrot.slane %v321, %v586
        %v588 = vmul.f32 %v570, %v575
        %v589 = vmul.f32 %v569, %v579
        %v590 = vmul.f32 %v568, %v583
        %v591 = vmul.f32 %v571, %v587
        %592 = vst [vmem:[#allocation2 + $0xe0] sm:$0xff] %v588
        %593 = vst [vmem:[#allocation2 + $0xe8] sm:$0xff] %v589
        %594 = vst [vmem:[#allocation2 + $0xf0] sm:$0xff] %v590
        %595 = vst [vmem:[#allocation2 + $0xf8] sm:$0xff] %v591
        %596 = vrot.lane.b32.xlu0 %v326, 111
        %v597 = vpop.permute.xlu0 %596
        %598 = vrot.lane.b32.xlu0 %v327, 111
        %v599 = vpop.permute.xlu0 %598
        %600 = vrot.lane.b32.xlu0 %v328, 111
        %v601 = vpop.permute.xlu0 %600
        %602 = vrot.lane.b32.xlu0 %v329, 111
        %v603 = vpop.permute.xlu0 %602
        %vm604 = vcmp.lt.s32.totalorder %v340, 111
        %v605 = vsel %vm604, %v601, %v603
        %v606 = vsel %vm604, %v599, %v601
        %v607 = vsel %vm604, %v597, %v599
        %v608 = vsel %vm604, %v603, %v597
        %v609 = vlaneseq
        %v610 = vshrl.u32 %v609, 7
        %v611 = vsub.s32 0, %v610
        %v612 = vrot.slane %v322, %v611
        %v613 = vlaneseq
        %v614 = vshrl.u32 %v613, 7
        %v615 = vsub.s32 0, %v614
        %v616 = vrot.slane %v323, %v615
        %v617 = vlaneseq
        %v618 = vshrl.u32 %v617, 7
        %v619 = vsub.s32 0, %v618
        %v620 = vrot.slane %v324, %v619
        %v621 = vlaneseq
        %v622 = vshrl.u32 %v621, 7
        %v623 = vsub.s32 0, %v622
        %v624 = vrot.slane %v325, %v623
        %v625 = vmul.f32 %v607, %v612
        %v626 = vmul.f32 %v606, %v616
        %v627 = vmul.f32 %v605, %v620
        %v628 = vmul.f32 %v608, %v624
        %629 = vst [vmem:[#allocation2 + $0x100] sm:$0xff] %v625
        %630 = vst [vmem:[#allocation2 + $0x108] sm:$0xff] %v626
        %631 = vst [vmem:[#allocation2 + $0x110] sm:$0xff] %v627
        %632 = vst [vmem:[#allocation2 + $0x118] sm:$0xff] %v628
        %v633 = vld [vmem:[#allocation2] sm:$0xff]
        %v634 = vld [vmem:[#allocation2 + $0x8] sm:$0xff]
        %v635 = vld [vmem:[#allocation2 + $0x10] sm:$0xff]
        %v636 = vld [vmem:[#allocation2 + $0x18] sm:$0xff]
        %v637 = vld [vmem:[#allocation2 + $0x20] sm:$0xff]
        %v638 = vld [vmem:[#allocation2 + $0x28] sm:$0xff]
        %v639 = vld [vmem:[#allocation2 + $0x30] sm:$0xff]
        %v640 = vld [vmem:[#allocation2 + $0x38] sm:$0xff]
        %v641 = vld [vmem:[#allocation2 + $0x40] sm:$0xff]
        %v642 = vld [vmem:[#allocation2 + $0x48] sm:$0xff]
        %v643 = vld [vmem:[#allocation2 + $0x50] sm:$0xff]
        %v644 = vld [vmem:[#allocation2 + $0x58] sm:$0xff]
        %v645 = vld [vmem:[#allocation2 + $0x60] sm:$0xff]
        %v646 = vld [vmem:[#allocation2 + $0x68] sm:$0xff]
        %v647 = vld [vmem:[#allocation2 + $0x70] sm:$0xff]
        %v648 = vld [vmem:[#allocation2 + $0x78] sm:$0xff]
        %v649 = vld [vmem:[#allocation2 + $0x80] sm:$0xff]
        %v650 = vld [vmem:[#allocation2 + $0x88] sm:$0xff]
        %v651 = vld [vmem:[#allocation2 + $0x90] sm:$0xff]
        %v652 = vld [vmem:[#allocation2 + $0x98] sm:$0xff]
        %v653 = vld [vmem:[#allocation2 + $0xa0] sm:$0xff]
        %v654 = vld [vmem:[#allocation2 + $0xa8] sm:$0xff]
        %v655 = vld [vmem:[#allocation2 + $0xb0] sm:$0xff]
        %v656 = vld [vmem:[#allocation2 + $0xb8] sm:$0xff]
        %v657 = vld [vmem:[#allocation2 + $0xc0] sm:$0xff]
        %v658 = vld [vmem:[#allocation2 + $0xc8] sm:$0xff]
        %v659 = vld [vmem:[#allocation2 + $0xd0] sm:$0xff]
        %v660 = vld [vmem:[#allocation2 + $0xd8] sm:$0xff]
        %v661 = vld [vmem:[#allocation2 + $0xe0] sm:$0xff]
        %v662 = vld [vmem:[#allocation2 + $0xe8] sm:$0xff]
        %v663 = vld [vmem:[#allocation2 + $0xf0] sm:$0xff]
        %v664 = vld [vmem:[#allocation2 + $0xf8] sm:$0xff]
        %v665 = vld [vmem:[#allocation2 + $0x100] sm:$0xff]
        %v666 = vld [vmem:[#allocation2 + $0x108] sm:$0xff]
        %v667 = vld [vmem:[#allocation2 + $0x110] sm:$0xff]
        %v668 = vld [vmem:[#allocation2 + $0x118] sm:$0xff]
        %v669 = vld [vmem:[#allocation2 + $0x120] sm:$0xff]
        %v670 = vld [vmem:[#allocation2 + $0x128] sm:$0xff]
        %v671 = vld [vmem:[#allocation2 + $0x130] sm:$0xff]
        %v672 = vld [vmem:[#allocation2 + $0x138] sm:$0xff]
        %v673 = vld [vmem:[#allocation2 + $0x140] sm:$0xff]
        %v674 = vld [vmem:[#allocation2 + $0x148] sm:$0xff]
        %v675 = vld [vmem:[#allocation2 + $0x150] sm:$0xff]
        %v676 = vld [vmem:[#allocation2 + $0x158] sm:$0xff]
        %v677 = vld [vmem:[#allocation2 + $0x160] sm:$0xff]
        %v678 = vld [vmem:[#allocation2 + $0x168] sm:$0xff]
        %v679 = vld [vmem:[#allocation2 + $0x170] sm:$0xff]
        %v680 = vld [vmem:[#allocation2 + $0x178] sm:$0xff]
        %v681 = vld [vmem:[#allocation2 + $0x180] sm:$0xff]
        %v682 = vld [vmem:[#allocation2 + $0x188] sm:$0xff]
        %v683 = vld [vmem:[#allocation2 + $0x190] sm:$0xff]
        %v684 = vld [vmem:[#allocation2 + $0x198] sm:$0xff]
        %v685 = vld [vmem:[#allocation2 + $0x1a0] sm:$0xff]
        %v686 = vld [vmem:[#allocation2 + $0x1a8] sm:$0xff]
        %v687 = vld [vmem:[#allocation2 + $0x1b0] sm:$0xff]
        %v688 = vld [vmem:[#allocation2 + $0x1b8] sm:$0xff]
        %v689 = vld [vmem:[#allocation2 + $0x1c0] sm:$0xff]
        %v690 = vld [vmem:[#allocation2 + $0x1c8] sm:$0xff]
        %v691 = vld [vmem:[#allocation2 + $0x1d0] sm:$0xff]
        %v692 = vld [vmem:[#allocation2 + $0x1d8] sm:$0xff]
        %v693 = vld [vmem:[#allocation2 + $0x1e0] sm:$0xff]
        %v694 = vld [vmem:[#allocation2 + $0x1e8] sm:$0xff]
        %v695 = vld [vmem:[#allocation2 + $0x1f0] sm:$0xff]
        %v696 = vld [vmem:[#allocation2 + $0x1f8] sm:$0xff]
        %v697 = vpack.c.bf16 %v637, %v633
        %v698 = vpack.c.bf16 %v638, %v634
        %v699 = vpack.c.bf16 %v639, %v635
        %v700 = vpack.c.bf16 %v640, %v636
        %v701 = vpack.c.bf16 %v645, %v641
        %v702 = vpack.c.bf16 %v646, %v642
        %v703 = vpack.c.bf16 %v647, %v643
        %v704 = vpack.c.bf16 %v648, %v644
        %v705 = vpack.c.bf16 %v653, %v649
        %v706 = vpack.c.bf16 %v654, %v650
        %v707 = vpack.c.bf16 %v655, %v651
        %v708 = vpack.c.bf16 %v656, %v652
        %v709 = vpack.c.bf16 %v661, %v657
        %v710 = vpack.c.bf16 %v662, %v658
        %v711 = vpack.c.bf16 %v663, %v659
        %v712 = vpack.c.bf16 %v664, %v660
        %v713 = vpack.c.bf16 %v669, %v665
        %v714 = vpack.c.bf16 %v670, %v666
        %v715 = vpack.c.bf16 %v671, %v667
        %v716 = vpack.c.bf16 %v672, %v668
        %v717 = vpack.c.bf16 %v677, %v673
        %v718 = vpack.c.bf16 %v678, %v674
        %v719 = vpack.c.bf16 %v679, %v675
        %v720 = vpack.c.bf16 %v680, %v676
        %v721 = vpack.c.bf16 %v685, %v681
        %v722 = vpack.c.bf16 %v686, %v682
        %v723 = vpack.c.bf16 %v687, %v683
        %v724 = vpack.c.bf16 %v688, %v684
        %v725 = vpack.c.bf16 %v693, %v689
        %v726 = vpack.c.bf16 %v694, %v690
        %v727 = vpack.c.bf16 %v695, %v691
        %v728 = vpack.c.bf16 %v696, %v692
        %729 = vmatprep.subr.bf16.mxu0 %v698
        %730 = vmatpush1.bf16.msra.mxu0 %v697
        %731 = vmatprep.subr.bf16.mxu0 %v702
        %732 = vmatpush1.bf16.msra.mxu0 %v701
        %733 = vmatprep.subr.bf16.mxu0 %v706
        %734 = vmatpush1.bf16.msra.mxu0 %v705
        %735 = vmatprep.subr.bf16.mxu0 %v710
        %736 = vmatpush1.bf16.msra.mxu0 %v709
        %737 = vmatprep.subr.bf16.mxu0 %v714
        %738 = vmatpush1.bf16.msra.mxu0 %v713
        %739 = vmatprep.subr.bf16.mxu0 %v718
        %740 = vmatpush1.bf16.msra.mxu0 %v717
        %741 = vmatprep.subr.bf16.mxu0 %v722
        %742 = vmatpush1.bf16.msra.mxu0 %v721
        %743 = vmatprep.subr.bf16.mxu0 %v726
        %744 = vmatpush1.bf16.msra.mxu0 %v725
        %745 = vmatprep.subr.bf16.mxu0 0
        %746 = vmatpush1.bf16.msra.mxu0 0
        %747 = vmatprep.subr.bf16.mxu0 0
        %748 = vmatpush1.bf16.msra.mxu0 0
        %749 = vmatprep.subr.bf16.mxu0 0
        %750 = vmatpush1.bf16.msra.mxu0 0
        %751 = vmatprep.subr.bf16.mxu0 0
        %752 = vmatpush1.bf16.msra.mxu0 0
        %753 = vmatprep.subr.bf16.mxu0 0
        %754 = vmatpush1.bf16.msra.mxu0 0
        %755 = vmatprep.subr.bf16.mxu0 0
        %756 = vmatpush1.bf16.msra.mxu0 0
        %757 = vmatprep.subr.bf16.mxu0 0
        %758 = vmatpush1.bf16.msra.mxu0 0
        %759 = vmatprep.subr.bf16.mxu0 0
        %760 = vmatpush1.bf16.msra.mxu0 0
        %761 = vmatprep.mubr.bf16.mxu0 0
        %762 = vmatmul.mubr.bf16.gmra.mrb[0].mxu0 %v330
        %v763 = vpop.f32.mrb[0].mxu0
        %v764 = vadd.f32 0.0, %v763
        %v765 = vpop.f32.mrb[0].mxu0
        %v766 = vadd.f32 0.0, %v765
        %v767 = vpop.f32.mrb[0].mxu0
        %v768 = vpop.f32.mrb[0].mxu0
        %769 = vdwg.mxu0
        %770 = vmatprep.subr.bf16.mxu0 %v700
        %771 = vmatpush1.bf16.msra.mxu0 %v699
        %772 = vmatprep.subr.bf16.mxu0 %v704
        %773 = vmatpush1.bf16.msra.mxu0 %v703
        %774 = vmatprep.subr.bf16.mxu0 %v708
        %775 = vmatpush1.bf16.msra.mxu0 %v707
        %776 = vmatprep.subr.bf16.mxu0 %v712
        %777 = vmatpush1.bf16.msra.mxu0 %v711
        %778 = vmatprep.subr.bf16.mxu0 %v716
        %779 = vmatpush1.bf16.msra.mxu0 %v715
        %780 = vmatprep.subr.bf16.mxu0 %v720
        %781 = vmatpush1.bf16.msra.mxu0 %v719
        %782 = vmatprep.subr.bf16.mxu0 %v724
        %783 = vmatpush1.bf16.msra.mxu0 %v723
        %784 = vmatprep.subr.bf16.mxu0 %v728
        %785 = vmatpush1.bf16.msra.mxu0 %v727
        %786 = vmatprep.subr.bf16.mxu0 0
        %787 = vmatpush1.bf16.msra.mxu0 0
        %788 = vmatprep.subr.bf16.mxu0 0
        %789 = vmatpush1.bf16.msra.mxu0 0
        %790 = vmatprep.subr.bf16.mxu0 0
        %791 = vmatpush1.bf16.msra.mxu0 0
        %792 = vmatprep.subr.bf16.mxu0 0
        %793 = vmatpush1.bf16.msra.mxu0 0
        %794 = vmatprep.subr.bf16.mxu0 0
        %795 = vmatpush1.bf16.msra.mxu0 0
        %796 = vmatprep.subr.bf16.mxu0 0
        %797 = vmatpush1.bf16.msra.mxu0 0
        %798 = vmatprep.subr.bf16.mxu0 0
        %799 = vmatpush1.bf16.msra.mxu0 0
        %800 = vmatprep.subr.bf16.mxu0 0
        %801 = vmatpush1.bf16.msra.mxu0 0
        %802 = vmatprep.mubr.bf16.mxu0 0
        %803 = vmatmul.mubr.bf16.gmra.mrb[0].mxu0 %v330
        %v804 = vpop.f32.mrb[0].mxu0
        %v805 = vadd.f32 0.0, %v804
        %v806 = vpop.f32.mrb[0].mxu0
        %v807 = vadd.f32 0.0, %v806
        %v808 = vpop.f32.mrb[0].mxu0
        %v809 = vpop.f32.mrb[0].mxu0
        %810 = vdwg.mxu0
        %v811 = vmax.f32 %v764, 0.0
        %v812 = vmax.f32 %v766, 0.0
        %v813 = vmax.f32 %v805, 0.0
        %v814 = vmax.f32 %v807, 0.0
        %v815 = vld [vmem:[#allocation8] sm:$0xf]
        %816 = vrot.lane.b32.xlu0 %v811, 17
        %v817 = vpop.permute.xlu0 %816
        %818 = vrot.lane.b32.xlu0 %v812, 17
        %v819 = vpop.permute.xlu0 %818
        %820 = vrot.lane.b32.xlu0 %v813, 17
        %v821 = vpop.permute.xlu0 %820
        %822 = vrot.lane.b32.xlu0 %v814, 17
        %v823 = vpop.permute.xlu0 %822
        %v824 = vsel %vm341, %v821, %v823
        %v825 = vsel %vm341, %v819, %v821
        %v826 = vsel %vm341, %v817, %v819
        %v827 = vsel %vm341, %v823, %v817
        %v828 = vmul.f32 %v827, %v349
        %v829 = vmul.f32 %v826, %v353
        %v830 = vmul.f32 %v825, %v357
        %v831 = vmul.f32 %v824, %v361
        %832 = vst [vmem:[#allocation2] sm:$0xff] %v828
        %833 = vst [vmem:[#allocation2 + $0x8] sm:$0xff] %v829
        %834 = vst [vmem:[#allocation2 + $0x10] sm:$0xff] %v830
        %835 = vst [vmem:[#allocation2 + $0x18] sm:$0xff] %v831
        %836 = vrot.lane.b32.xlu0 %v811, 16
        %v837 = vpop.permute.xlu0 %836
        %838 = vrot.lane.b32.xlu0 %v812, 16
        %v839 = vpop.permute.xlu0 %838
        %840 = vrot.lane.b32.xlu0 %v813, 16
        %v841 = vpop.permute.xlu0 %840
        %842 = vrot.lane.b32.xlu0 %v814, 16
        %v843 = vpop.permute.xlu0 %842
        %v844 = vsel %vm378, %v841, %v843
        %v845 = vsel %vm378, %v839, %v841
        %v846 = vsel %vm378, %v837, %v839
        %v847 = vsel %vm378, %v843, %v837
        %v848 = vmul.f32 %v847, %v386
        %v849 = vmul.f32 %v846, %v390
        %v850 = vmul.f32 %v845, %v394
        %v851 = vmul.f32 %v844, %v398
        %852 = vst [vmem:[#allocation2 + $0x20] sm:$0xff] %v848
        %853 = vst [vmem:[#allocation2 + $0x28] sm:$0xff] %v849
        %854 = vst [vmem:[#allocation2 + $0x30] sm:$0xff] %v850
        %855 = vst [vmem:[#allocation2 + $0x38] sm:$0xff] %v851
        %856 = vrot.lane.b32.xlu0 %v811, 15
        %v857 = vpop.permute.xlu0 %856
        %858 = vrot.lane.b32.xlu0 %v812, 15
        %v859 = vpop.permute.xlu0 %858
        %860 = vrot.lane.b32.xlu0 %v813, 15
        %v861 = vpop.permute.xlu0 %860
        %862 = vrot.lane.b32.xlu0 %v814, 15
        %v863 = vpop.permute.xlu0 %862
        %v864 = vsel %vm415, %v861, %v863
        %v865 = vsel %vm415, %v859, %v861
        %v866 = vsel %vm415, %v857, %v859
        %v867 = vsel %vm415, %v863, %v857
        %v868 = vmul.f32 %v867, %v423
        %v869 = vmul.f32 %v866, %v427
        %v870 = vmul.f32 %v865, %v431
        %v871 = vmul.f32 %v864, %v435
        %872 = vst [vmem:[#allocation2 + $0x40] sm:$0xff] %v868
        %873 = vst [vmem:[#allocation2 + $0x48] sm:$0xff] %v869
        %874 = vst [vmem:[#allocation2 + $0x50] sm:$0xff] %v870
        %875 = vst [vmem:[#allocation2 + $0x58] sm:$0xff] %v871
        %876 = vrot.lane.b32.xlu0 %v811, 1
        %v877 = vpop.permute.xlu0 %876
        %878 = vrot.lane.b32.xlu0 %v812, 1
        %v879 = vpop.permute.xlu0 %878
        %880 = vrot.lane.b32.xlu0 %v813, 1
        %v881 = vpop.permute.xlu0 %880
        %882 = vrot.lane.b32.xlu0 %v814, 1
        %v883 = vpop.permute.xlu0 %882
        %v884 = vsel %vm452, %v881, %v883
        %v885 = vsel %vm452, %v879, %v881
        %v886 = vsel %vm452, %v877, %v879
        %v887 = vsel %vm452, %v883, %v877
        %v888 = vmul.f32 %v887, %v460
        %v889 = vmul.f32 %v886, %v464
        %v890 = vmul.f32 %v885, %v468
        %v891 = vmul.f32 %v884, %v472
        %892 = vst [vmem:[#allocation2 + $0x60] sm:$0xff] %v888
        %893 = vst [vmem:[#allocation2 + $0x68] sm:$0xff] %v889
        %894 = vst [vmem:[#allocation2 + $0x70] sm:$0xff] %v890
        %895 = vst [vmem:[#allocation2 + $0x78] sm:$0xff] %v891
        %896 = vst [vmem:[#allocation2 + $0x80] sm:$0xff] %v811
        %897 = vst [vmem:[#allocation2 + $0x88] sm:$0xff] %v812
        %898 = vst [vmem:[#allocation2 + $0x90] sm:$0xff] %v813
        %899 = vst [vmem:[#allocation2 + $0x98] sm:$0xff] %v814
        %900 = vrot.lane.b32.xlu0 %v811, 127
        %v901 = vpop.permute.xlu0 %900
        %902 = vrot.lane.b32.xlu0 %v812, 127
        %v903 = vpop.permute.xlu0 %902
        %904 = vrot.lane.b32.xlu0 %v813, 127
        %v905 = vpop.permute.xlu0 %904
        %906 = vrot.lane.b32.xlu0 %v814, 127
        %v907 = vpop.permute.xlu0 %906
        %v908 = vsel %vm493, %v905, %v907
        %v909 = vsel %vm493, %v903, %v905
        %v910 = vsel %vm493, %v901, %v903
        %v911 = vsel %vm493, %v907, %v901
        %v912 = vmul.f32 %v910, %v501
        %v913 = vmul.f32 %v909, %v505
        %v914 = vmul.f32 %v908, %v509
        %v915 = vmul.f32 %v911, %v513
        %916 = vst [vmem:[#allocation2 + $0xa0] sm:$0xff] %v912
        %917 = vst [vmem:[#allocation2 + $0xa8] sm:$0xff] %v913
        %918 = vst [vmem:[#allocation2 + $0xb0] sm:$0xff] %v914
        %919 = vst [vmem:[#allocation2 + $0xb8] sm:$0xff] %v915
        %920 = vrot.lane.b32.xlu0 %v811, 113
        %v921 = vpop.permute.xlu0 %920
        %922 = vrot.lane.b32.xlu0 %v812, 113
        %v923 = vpop.permute.xlu0 %922
        %924 = vrot.lane.b32.xlu0 %v813, 113
        %v925 = vpop.permute.xlu0 %924
        %926 = vrot.lane.b32.xlu0 %v814, 113
        %v927 = vpop.permute.xlu0 %926
        %v928 = vsel %vm530, %v925, %v927
        %v929 = vsel %vm530, %v923, %v925
        %v930 = vsel %vm530, %v921, %v923
        %v931 = vsel %vm530, %v927, %v921
        %v932 = vmul.f32 %v930, %v538
        %v933 = vmul.f32 %v929, %v542
        %v934 = vmul.f32 %v928, %v546
        %v935 = vmul.f32 %v931, %v550
        %936 = vst [vmem:[#allocation2 + $0xc0] sm:$0xff] %v932
        %937 = vst [vmem:[#allocation2 + $0xc8] sm:$0xff] %v933
        %938 = vst [vmem:[#allocation2 + $0xd0] sm:$0xff] %v934
        %939 = vst [vmem:[#allocation2 + $0xd8] sm:$0xff] %v935
        %940 = vrot.lane.b32.xlu0 %v811, 112
        %v941 = vpop.permute.xlu0 %940
        %942 = vrot.lane.b32.xlu0 %v812, 112
        %v943 = vpop.permute.xlu0 %942
        %944 = vrot.lane.b32.xlu0 %v813, 112
        %v945 = vpop.permute.xlu0 %944
        %946 = vrot.lane.b32.xlu0 %v814, 112
        %v947 = vpop.permute.xlu0 %946
        %v948 = vsel %vm567, %v945, %v947
        %v949 = vsel %vm567, %v943, %v945
        %v950 = vsel %vm567, %v941, %v943
        %v951 = vsel %vm567, %v947, %v941
        %v952 = vmul.f32 %v950, %v575
        %v953 = vmul.f32 %v949, %v579
        %v954 = vmul.f32 %v948, %v583
        %v955 = vmul.f32 %v951, %v587
        %956 = vst [vmem:[#allocation2 + $0xe0] sm:$0xff] %v952
        %957 = vst [vmem:[#allocation2 + $0xe8] sm:$0xff] %v953
        %958 = vst [vmem:[#allocation2 + $0xf0] sm:$0xff] %v954
        %959 = vst [vmem:[#allocation2 + $0xf8] sm:$0xff] %v955
        %960 = vrot.lane.b32.xlu0 %v811, 111
        %v961 = vpop.permute.xlu0 %960
        %962 = vrot.lane.b32.xlu0 %v812, 111
        %v963 = vpop.permute.xlu0 %962
        %964 = vrot.lane.b32.xlu0 %v813, 111
        %v965 = vpop.permute.xlu0 %964
        %966 = vrot.lane.b32.xlu0 %v814, 111
        %v967 = vpop.permute.xlu0 %966
        %v968 = vsel %vm604, %v965, %v967
        %v969 = vsel %vm604, %v963, %v965
        %v970 = vsel %vm604, %v961, %v963
        %v971 = vsel %vm604, %v967, %v961
        %v972 = vmul.f32 %v970, %v612
        %v973 = vmul.f32 %v969, %v616
        %v974 = vmul.f32 %v968, %v620
        %v975 = vmul.f32 %v971, %v624
        %976 = vst [vmem:[#allocation2 + $0x100] sm:$0xff] %v972
        %977 = vst [vmem:[#allocation2 + $0x108] sm:$0xff] %v973
        %978 = vst [vmem:[#allocation2 + $0x110] sm:$0xff] %v974
        %979 = vst [vmem:[#allocation2 + $0x118] sm:$0xff] %v975
        %v980 = vld [vmem:[#allocation2] sm:$0xff]
        %v981 = vld [vmem:[#allocation2 + $0x8] sm:$0xff]
        %v982 = vld [vmem:[#allocation2 + $0x10] sm:$0xff]
        %v983 = vld [vmem:[#allocation2 + $0x18] sm:$0xff]
        %v984 = vld [vmem:[#allocation2 + $0x20] sm:$0xff]
        %v985 = vld [vmem:[#allocation2 + $0x28] sm:$0xff]
        %v986 = vld [vmem:[#allocation2 + $0x30] sm:$0xff]
        %v987 = vld [vmem:[#allocation2 + $0x38] sm:$0xff]
        %v988 = vld [vmem:[#allocation2 + $0x40] sm:$0xff]
        %v989 = vld [vmem:[#allocation2 + $0x48] sm:$0xff]
        %v990 = vld [vmem:[#allocation2 + $0x50] sm:$0xff]
        %v991 = vld [vmem:[#allocation2 + $0x58] sm:$0xff]
        %v992 = vld [vmem:[#allocation2 + $0x60] sm:$0xff]
        %v993 = vld [vmem:[#allocation2 + $0x68] sm:$0xff]
        %v994 = vld [vmem:[#allocation2 + $0x70] sm:$0xff]
        %v995 = vld [vmem:[#allocation2 + $0x78] sm:$0xff]
        %v996 = vld [vmem:[#allocation2 + $0x80] sm:$0xff]
        %v997 = vld [vmem:[#allocation2 + $0x88] sm:$0xff]
        %v998 = vld [vmem:[#allocation2 + $0x90] sm:$0xff]
        %v999 = vld [vmem:[#allocation2 + $0x98] sm:$0xff]
        %v1000 = vld [vmem:[#allocation2 + $0xa0] sm:$0xff]
        %v1001 = vld [vmem:[#allocation2 + $0xa8] sm:$0xff]
        %v1002 = vld [vmem:[#allocation2 + $0xb0] sm:$0xff]
        %v1003 = vld [vmem:[#allocation2 + $0xb8] sm:$0xff]
        %v1004 = vld [vmem:[#allocation2 + $0xc0] sm:$0xff]
        %v1005 = vld [vmem:[#allocation2 + $0xc8] sm:$0xff]
        %v1006 = vld [vmem:[#allocation2 + $0xd0] sm:$0xff]
        %v1007 = vld [vmem:[#allocation2 + $0xd8] sm:$0xff]
        %v1008 = vld [vmem:[#allocation2 + $0xe0] sm:$0xff]
        %v1009 = vld [vmem:[#allocation2 + $0xe8] sm:$0xff]
        %v1010 = vld [vmem:[#allocation2 + $0xf0] sm:$0xff]
        %v1011 = vld [vmem:[#allocation2 + $0xf8] sm:$0xff]
        %v1012 = vld [vmem:[#allocation2 + $0x100] sm:$0xff]
        %v1013 = vld [vmem:[#allocation2 + $0x108] sm:$0xff]
        %v1014 = vld [vmem:[#allocation2 + $0x110] sm:$0xff]
        %v1015 = vld [vmem:[#allocation2 + $0x118] sm:$0xff]
        %v1016 = vld [vmem:[#allocation2 + $0x120] sm:$0xff]
        %v1017 = vld [vmem:[#allocation2 + $0x128] sm:$0xff]
        %v1018 = vld [vmem:[#allocation2 + $0x130] sm:$0xff]
        %v1019 = vld [vmem:[#allocation2 + $0x138] sm:$0xff]
        %v1020 = vld [vmem:[#allocation2 + $0x140] sm:$0xff]
        %v1021 = vld [vmem:[#allocation2 + $0x148] sm:$0xff]
        %v1022 = vld [vmem:[#allocation2 + $0x150] sm:$0xff]
        %v1023 = vld [vmem:[#allocation2 + $0x158] sm:$0xff]
        %v1024 = vld [vmem:[#allocation2 + $0x160] sm:$0xff]
        %v1025 = vld [vmem:[#allocation2 + $0x168] sm:$0xff]
        %v1026 = vld [vmem:[#allocation2 + $0x170] sm:$0xff]
        %v1027 = vld [vmem:[#allocation2 + $0x178] sm:$0xff]
        %v1028 = vld [vmem:[#allocation2 + $0x180] sm:$0xff]
        %v1029 = vld [vmem:[#allocation2 + $0x188] sm:$0xff]
        %v1030 = vld [vmem:[#allocation2 + $0x190] sm:$0xff]
        %v1031 = vld [vmem:[#allocation2 + $0x198] sm:$0xff]
        %v1032 = vld [vmem:[#allocation2 + $0x1a0] sm:$0xff]
        %v1033 = vld [vmem:[#allocation2 + $0x1a8] sm:$0xff]
        %v1034 = vld [vmem:[#allocation2 + $0x1b0] sm:$0xff]
        %v1035 = vld [vmem:[#allocation2 + $0x1b8] sm:$0xff]
        %v1036 = vld [vmem:[#allocation2 + $0x1c0] sm:$0xff]
        %v1037 = vld [vmem:[#allocation2 + $0x1c8] sm:$0xff]
        %v1038 = vld [vmem:[#allocation2 + $0x1d0] sm:$0xff]
        %v1039 = vld [vmem:[#allocation2 + $0x1d8] sm:$0xff]
        %v1040 = vld [vmem:[#allocation2 + $0x1e0] sm:$0xff]
        %v1041 = vld [vmem:[#allocation2 + $0x1e8] sm:$0xff]
        %v1042 = vld [vmem:[#allocation2 + $0x1f0] sm:$0xff]
        %v1043 = vld [vmem:[#allocation2 + $0x1f8] sm:$0xff]
        %v1044 = vpack.c.bf16 %v984, %v980
        %v1045 = vpack.c.bf16 %v985, %v981
        %v1046 = vpack.c.bf16 %v986, %v982
        %v1047 = vpack.c.bf16 %v987, %v983
        %v1048 = vpack.c.bf16 %v992, %v988
        %v1049 = vpack.c.bf16 %v993, %v989
        %v1050 = vpack.c.bf16 %v994, %v990
        %v1051 = vpack.c.bf16 %v995, %v991
        %v1052 = vpack.c.bf16 %v1000, %v996
        %v1053 = vpack.c.bf16 %v1001, %v997
        %v1054 = vpack.c.bf16 %v1002, %v998
        %v1055 = vpack.c.bf16 %v1003, %v999
        %v1056 = vpack.c.bf16 %v1008, %v1004
        %v1057 = vpack.c.bf16 %v1009, %v1005
        %v1058 = vpack.c.bf16 %v1010, %v1006
        %v1059 = vpack.c.bf16 %v1011, %v1007
        %v1060 = vpack.c.bf16 %v1016, %v1012
        %v1061 = vpack.c.bf16 %v1017, %v1013
        %v1062 = vpack.c.bf16 %v1018, %v1014
        %v1063 = vpack.c.bf16 %v1019, %v1015
        %v1064 = vpack.c.bf16 %v1024, %v1020
        %v1065 = vpack.c.bf16 %v1025, %v1021
        %v1066 = vpack.c.bf16 %v1026, %v1022
        %v1067 = vpack.c.bf16 %v1027, %v1023
        %v1068 = vpack.c.bf16 %v1032, %v1028
        %v1069 = vpack.c.bf16 %v1033, %v1029
        %v1070 = vpack.c.bf16 %v1034, %v1030
        %v1071 = vpack.c.bf16 %v1035, %v1031
        %v1072 = vpack.c.bf16 %v1040, %v1036
        %v1073 = vpack.c.bf16 %v1041, %v1037
        %v1074 = vpack.c.bf16 %v1042, %v1038
        %v1075 = vpack.c.bf16 %v1043, %v1039
        %1076 = vmatprep.subr.bf16.mxu0 %v1045
        %1077 = vmatpush1.bf16.msra.mxu0 %v1044
        %1078 = vmatprep.subr.bf16.mxu0 %v1049
        %1079 = vmatpush1.bf16.msra.mxu0 %v1048
        %1080 = vmatprep.subr.bf16.mxu0 %v1053
        %1081 = vmatpush1.bf16.msra.mxu0 %v1052
        %1082 = vmatprep.subr.bf16.mxu0 %v1057
        %1083 = vmatpush1.bf16.msra.mxu0 %v1056
        %1084 = vmatprep.subr.bf16.mxu0 %v1061
        %1085 = vmatpush1.bf16.msra.mxu0 %v1060
        %1086 = vmatprep.subr.bf16.mxu0 %v1065
        %1087 = vmatpush1.bf16.msra.mxu0 %v1064
        %1088 = vmatprep.subr.bf16.mxu0 %v1069
        %1089 = vmatpush1.bf16.msra.mxu0 %v1068
        %1090 = vmatprep.subr.bf16.mxu0 %v1073
        %1091 = vmatpush1.bf16.msra.mxu0 %v1072
        %1092 = vmatprep.subr.bf16.mxu0 0
        %1093 = vmatpush1.bf16.msra.mxu0 0
        %1094 = vmatprep.subr.bf16.mxu0 0
        %1095 = vmatpush1.bf16.msra.mxu0 0
        %1096 = vmatprep.subr.bf16.mxu0 0
        %1097 = vmatpush1.bf16.msra.mxu0 0
        %1098 = vmatprep.subr.bf16.mxu0 0
        %1099 = vmatpush1.bf16.msra.mxu0 0
        %1100 = vmatprep.subr.bf16.mxu0 0
        %1101 = vmatpush1.bf16.msra.mxu0 0
        %1102 = vmatprep.subr.bf16.mxu0 0
        %1103 = vmatpush1.bf16.msra.mxu0 0
        %1104 = vmatprep.subr.bf16.mxu0 0
        %1105 = vmatpush1.bf16.msra.mxu0 0
        %1106 = vmatprep.subr.bf16.mxu0 0
        %1107 = vmatpush1.bf16.msra.mxu0 0
        %1108 = vmatprep.mubr.bf16.mxu0 0
        %1109 = vmatmul.mubr.bf16.gmra.mrb[0].mxu0 %v815
        %v1110 = vpop.f32.mrb[0].mxu0
        %v1111 = vadd.f32 0.0, %v1110
        %v1112 = vpop.f32.mrb[0].mxu0
        %v1113 = vadd.f32 0.0, %v1112
        %v1114 = vpop.f32.mrb[0].mxu0
        %v1115 = vpop.f32.mrb[0].mxu0
        %1116 = vdwg.mxu0
        %1117 = vmatprep.subr.bf16.mxu0 %v1047
        %1118 = vmatpush1.bf16.msra.mxu0 %v1046
        %1119 = vmatprep.subr.bf16.mxu0 %v1051
        %1120 = vmatpush1.bf16.msra.mxu0 %v1050
        %1121 = vmatprep.subr.bf16.mxu0 %v1055
        %1122 = vmatpush1.bf16.msra.mxu0 %v1054
        %1123 = vmatprep.subr.bf16.mxu0 %v1059
        %1124 = vmatpush1.bf16.msra.mxu0 %v1058
        %1125 = vmatprep.subr.bf16.mxu0 %v1063
        %1126 = vmatpush1.bf16.msra.mxu0 %v1062
        %1127 = vmatprep.subr.bf16.mxu0 %v1067
        %1128 = vmatpush1.bf16.msra.mxu0 %v1066
        %1129 = vmatprep.subr.bf16.mxu0 %v1071
        %1130 = vmatpush1.bf16.msra.mxu0 %v1070
        %1131 = vmatprep.subr.bf16.mxu0 %v1075
        %1132 = vmatpush1.bf16.msra.mxu0 %v1074
        %1133 = vmatprep.subr.bf16.mxu0 0
        %1134 = vmatpush1.bf16.msra.mxu0 0
        %1135 = vmatprep.subr.bf16.mxu0 0
        %1136 = vmatpush1.bf16.msra.mxu0 0
        %1137 = vmatprep.subr.bf16.mxu0 0
        %1138 = vmatpush1.bf16.msra.mxu0 0
        %1139 = vmatprep.subr.bf16.mxu0 0
        %1140 = vmatpush1.bf16.msra.mxu0 0
        %1141 = vmatprep.subr.bf16.mxu0 0
        %1142 = vmatpush1.bf16.msra.mxu0 0
        %1143 = vmatprep.subr.bf16.mxu0 0
        %1144 = vmatpush1.bf16.msra.mxu0 0
        %1145 = vmatprep.subr.bf16.mxu0 0
        %1146 = vmatpush1.bf16.msra.mxu0 0
        %1147 = vmatprep.subr.bf16.mxu0 0
        %1148 = vmatpush1.bf16.msra.mxu0 0
        %1149 = vmatprep.mubr.bf16.mxu0 0
        %1150 = vmatmul.mubr.bf16.gmra.mrb[0].mxu0 %v815
        %v1151 = vpop.f32.mrb[0].mxu0
        %v1152 = vadd.f32 0.0, %v1151
        %v1153 = vpop.f32.mrb[0].mxu0
        %v1154 = vadd.f32 0.0, %v1153
        %v1155 = vpop.f32.mrb[0].mxu0
        %v1156 = vpop.f32.mrb[0].mxu0
        %1157 = vdwg.mxu0
        %v1158 = vadd.f32 %v326, %v1111
        %v1159 = vadd.f32 %v327, %v1113
        %v1160 = vadd.f32 %v328, %v1152
        %v1161 = vadd.f32 %v329, %v1154
        %v1162 = vmax.f32 %v1158, 0.0
        %v1163 = vmax.f32 %v1159, 0.0
        %v1164 = vmax.f32 %v1160, 0.0
        %v1165 = vmax.f32 %v1161, 0.0
        %s1166 = scalar_lea.vmem [#allocation6], 4
        %v1167 = vld [vmem:[%s1166] sm:$0xf]
        %1168 = vrot.lane.b32.xlu0 %v1162, 17
        %v1169 = vpop.permute.xlu0 %1168
        %1170 = vrot.lane.b32.xlu0 %v1163, 17
        %v1171 = vpop.permute.xlu0 %1170
        %1172 = vrot.lane.b32.xlu0 %v1164, 17
        %v1173 = vpop.permute.xlu0 %1172
        %1174 = vrot.lane.b32.xlu0 %v1165, 17
        %v1175 = vpop.permute.xlu0 %1174
        %v1176 = vsel %vm341, %v1173, %v1175
        %v1177 = vsel %vm341, %v1171, %v1173
        %v1178 = vsel %vm341, %v1169, %v1171
        %v1179 = vsel %vm341, %v1175, %v1169
        %v1180 = vmul.f32 %v1179, %v349
        %v1181 = vmul.f32 %v1178, %v353
        %v1182 = vmul.f32 %v1177, %v357
        %v1183 = vmul.f32 %v1176, %v361
        %1184 = vst [vmem:[#allocation2] sm:$0xff] %v1180
        %1185 = vst [vmem:[#allocation2 + $0x8] sm:$0xff] %v1181
        %1186 = vst [vmem:[#allocation2 + $0x10] sm:$0xff] %v1182
        %1187 = vst [vmem:[#allocation2 + $0x18] sm:$0xff] %v1183
        %1188 = vrot.lane.b32.xlu0 %v1162, 16
        %v1189 = vpop.permute.xlu0 %1188
        %1190 = vrot.lane.b32.xlu0 %v1163, 16
        %v1191 = vpop.permute.xlu0 %1190
        %1192 = vrot.lane.b32.xlu0 %v1164, 16
        %v1193 = vpop.permute.xlu0 %1192
        %1194 = vrot.lane.b32.xlu0 %v1165, 16
        %v1195 = vpop.permute.xlu0 %1194
        %v1196 = vsel %vm378, %v1193, %v1195
        %v1197 = vsel %vm378, %v1191, %v1193
        %v1198 = vsel %vm378, %v1189, %v1191
        %v1199 = vsel %vm378, %v1195, %v1189
        %v1200 = vmul.f32 %v1199, %v386
        %v1201 = vmul.f32 %v1198, %v390
        %v1202 = vmul.f32 %v1197, %v394
        %v1203 = vmul.f32 %v1196, %v398
        %1204 = vst [vmem:[#allocation2 + $0x20] sm:$0xff] %v1200
        %1205 = vst [vmem:[#allocation2 + $0x28] sm:$0xff] %v1201
        %1206 = vst [vmem:[#allocation2 + $0x30] sm:$0xff] %v1202
        %1207 = vst [vmem:[#allocation2 + $0x38] sm:$0xff] %v1203
        %1208 = vrot.lane.b32.xlu0 %v1162, 15
        %v1209 = vpop.permute.xlu0 %1208
        %1210 = vrot.lane.b32.xlu0 %v1163, 15
        %v1211 = vpop.permute.xlu0 %1210
        %1212 = vrot.lane.b32.xlu0 %v1164, 15
        %v1213 = vpop.permute.xlu0 %1212
        %1214 = vrot.lane.b32.xlu0 %v1165, 15
        %v1215 = vpop.permute.xlu0 %1214
        %v1216 = vsel %vm415, %v1213, %v1215
        %v1217 = vsel %vm415, %v1211, %v1213
        %v1218 = vsel %vm415, %v1209, %v1211
        %v1219 = vsel %vm415, %v1215, %v1209
        %v1220 = vmul.f32 %v1219, %v423
        %v1221 = vmul.f32 %v1218, %v427
        %v1222 = vmul.f32 %v1217, %v431
        %v1223 = vmul.f32 %v1216, %v435
        %1224 = vst [vmem:[#allocation2 + $0x40] sm:$0xff] %v1220
        %1225 = vst [vmem:[#allocation2 + $0x48] sm:$0xff] %v1221
        %1226 = vst [vmem:[#allocation2 + $0x50] sm:$0xff] %v1222
        %1227 = vst [vmem:[#allocation2 + $0x58] sm:$0xff] %v1223
        %1228 = vrot.lane.b32.xlu0 %v1162, 1
        %v1229 = vpop.permute.xlu0 %1228
        %1230 = vrot.lane.b32.xlu0 %v1163, 1
        %v1231 = vpop.permute.xlu0 %1230
        %1232 = vrot.lane.b32.xlu0 %v1164, 1
        %v1233 = vpop.permute.xlu0 %1232
        %1234 = vrot.lane.b32.xlu0 %v1165, 1
        %v1235 = vpop.permute.xlu0 %1234
        %v1236 = vsel %vm452, %v1233, %v1235
        %v1237 = vsel %vm452, %v1231, %v1233
        %v1238 = vsel %vm452, %v1229, %v1231
        %v1239 = vsel %vm452, %v1235, %v1229
        %v1240 = vmul.f32 %v1239, %v460
        %v1241 = vmul.f32 %v1238, %v464
        %v1242 = vmul.f32 %v1237, %v468
        %v1243 = vmul.f32 %v1236, %v472
        %1244 = vst [vmem:[#allocation2 + $0x60] sm:$0xff] %v1240
        %1245 = vst [vmem:[#allocation2 + $0x68] sm:$0xff] %v1241
        %1246 = vst [vmem:[#allocation2 + $0x70] sm:$0xff] %v1242
        %1247 = vst [vmem:[#allocation2 + $0x78] sm:$0xff] %v1243
        %1248 = vst [vmem:[#allocation2 + $0x80] sm:$0xff] %v1162
        %1249 = vst [vmem:[#allocation2 + $0x88] sm:$0xff] %v1163
        %1250 = vst [vmem:[#allocation2 + $0x90] sm:$0xff] %v1164
        %1251 = vst [vmem:[#allocation2 + $0x98] sm:$0xff] %v1165
        %1252 = vrot.lane.b32.xlu0 %v1162, 127
        %v1253 = vpop.permute.xlu0 %1252
        %1254 = vrot.lane.b32.xlu0 %v1163, 127
        %v1255 = vpop.permute.xlu0 %1254
        %1256 = vrot.lane.b32.xlu0 %v1164, 127
        %v1257 = vpop.permute.xlu0 %1256
        %1258 = vrot.lane.b32.xlu0 %v1165, 127
        %v1259 = vpop.permute.xlu0 %1258
        %v1260 = vsel %vm493, %v1257, %v1259
        %v1261 = vsel %vm493, %v1255, %v1257
        %v1262 = vsel %vm493, %v1253, %v1255
        %v1263 = vsel %vm493, %v1259, %v1253
        %v1264 = vmul.f32 %v1262, %v501
        %v1265 = vmul.f32 %v1261, %v505
        %v1266 = vmul.f32 %v1260, %v509
        %v1267 = vmul.f32 %v1263, %v513
        %1268 = vst [vmem:[#allocation2 + $0xa0] sm:$0xff] %v1264
        %1269 = vst [vmem:[#allocation2 + $0xa8] sm:$0xff] %v1265
        %1270 = vst [vmem:[#allocation2 + $0xb0] sm:$0xff] %v1266
        %1271 = vst [vmem:[#allocation2 + $0xb8] sm:$0xff] %v1267
        %1272 = vrot.lane.b32.xlu0 %v1162, 113
        %v1273 = vpop.permute.xlu0 %1272
        %1274 = vrot.lane.b32.xlu0 %v1163, 113
        %v1275 = vpop.permute.xlu0 %1274
        %1276 = vrot.lane.b32.xlu0 %v1164, 113
        %v1277 = vpop.permute.xlu0 %1276
        %1278 = vrot.lane.b32.xlu0 %v1165, 113
        %v1279 = vpop.permute.xlu0 %1278
        %v1280 = vsel %vm530, %v1277, %v1279
        %v1281 = vsel %vm530, %v1275, %v1277
        %v1282 = vsel %vm530, %v1273, %v1275
        %v1283 = vsel %vm530, %v1279, %v1273
        %v1284 = vmul.f32 %v1282, %v538
        %v1285 = vmul.f32 %v1281, %v542
        %v1286 = vmul.f32 %v1280, %v546
        %v1287 = vmul.f32 %v1283, %v550
        %1288 = vst [vmem:[#allocation2 + $0xc0] sm:$0xff] %v1284
        %1289 = vst [vmem:[#allocation2 + $0xc8] sm:$0xff] %v1285
        %1290 = vst [vmem:[#allocation2 + $0xd0] sm:$0xff] %v1286
        %1291 = vst [vmem:[#allocation2 + $0xd8] sm:$0xff] %v1287
        %1292 = vrot.lane.b32.xlu0 %v1162, 112
        %v1293 = vpop.permute.xlu0 %1292
        %1294 = vrot.lane.b32.xlu0 %v1163, 112
        %v1295 = vpop.permute.xlu0 %1294
        %1296 = vrot.lane.b32.xlu0 %v1164, 112
        %v1297 = vpop.permute.xlu0 %1296
        %1298 = vrot.lane.b32.xlu0 %v1165, 112
        %v1299 = vpop.permute.xlu0 %1298
        %v1300 = vsel %vm567, %v1297, %v1299
        %v1301 = vsel %vm567, %v1295, %v1297
        %v1302 = vsel %vm567, %v1293, %v1295
        %v1303 = vsel %vm567, %v1299, %v1293
        %v1304 = vmul.f32 %v1302, %v575
        %v1305 = vmul.f32 %v1301, %v579
        %v1306 = vmul.f32 %v1300, %v583
        %v1307 = vmul.f32 %v1303, %v587
        %1308 = vst [vmem:[#allocation2 + $0xe0] sm:$0xff] %v1304
        %1309 = vst [vmem:[#allocation2 + $0xe8] sm:$0xff] %v1305
        %1310 = vst [vmem:[#allocation2 + $0xf0] sm:$0xff] %v1306
        %1311 = vst [vmem:[#allocation2 + $0xf8] sm:$0xff] %v1307
        %1312 = vrot.lane.b32.xlu0 %v1162, 111
        %v1313 = vpop.permute.xlu0 %1312
        %1314 = vrot.lane.b32.xlu0 %v1163, 111
        %v1315 = vpop.permute.xlu0 %1314
        %1316 = vrot.lane.b32.xlu0 %v1164, 111
        %v1317 = vpop.permute.xlu0 %1316
        %1318 = vrot.lane.b32.xlu0 %v1165, 111
        %v1319 = vpop.permute.xlu0 %1318
        %v1320 = vsel %vm604, %v1317, %v1319
        %v1321 = vsel %vm604, %v1315, %v1317
        %v1322 = vsel %vm604, %v1313, %v1315
        %v1323 = vsel %vm604, %v1319, %v1313
        %v1324 = vmul.f32 %v1322, %v612
        %v1325 = vmul.f32 %v1321, %v616
        %v1326 = vmul.f32 %v1320, %v620
        %v1327 = vmul.f32 %v1323, %v624
        %1328 = vst [vmem:[#allocation2 + $0x100] sm:$0xff] %v1324
        %1329 = vst [vmem:[#allocation2 + $0x108] sm:$0xff] %v1325
        %1330 = vst [vmem:[#allocation2 + $0x110] sm:$0xff] %v1326
        %1331 = vst [vmem:[#allocation2 + $0x118] sm:$0xff] %v1327
        %v1332 = vld [vmem:[#allocation2] sm:$0xff]
        %v1333 = vld [vmem:[#allocation2 + $0x8] sm:$0xff]
        %v1334 = vld [vmem:[#allocation2 + $0x10] sm:$0xff]
        %v1335 = vld [vmem:[#allocation2 + $0x18] sm:$0xff]
        %v1336 = vld [vmem:[#allocation2 + $0x20] sm:$0xff]
        %v1337 = vld [vmem:[#allocation2 + $0x28] sm:$0xff]
        %v1338 = vld [vmem:[#allocation2 + $0x30] sm:$0xff]
        %v1339 = vld [vmem:[#allocation2 + $0x38] sm:$0xff]
        %v1340 = vld [vmem:[#allocation2 + $0x40] sm:$0xff]
        %v1341 = vld [vmem:[#allocation2 + $0x48] sm:$0xff]
        %v1342 = vld [vmem:[#allocation2 + $0x50] sm:$0xff]
        %v1343 = vld [vmem:[#allocation2 + $0x58] sm:$0xff]
        %v1344 = vld [vmem:[#allocation2 + $0x60] sm:$0xff]
        %v1345 = vld [vmem:[#allocation2 + $0x68] sm:$0xff]
        %v1346 = vld [vmem:[#allocation2 + $0x70] sm:$0xff]
        %v1347 = vld [vmem:[#allocation2 + $0x78] sm:$0xff]
        %v1348 = vld [vmem:[#allocation2 + $0x80] sm:$0xff]
        %v1349 = vld [vmem:[#allocation2 + $0x88] sm:$0xff]
        %v1350 = vld [vmem:[#allocation2 + $0x90] sm:$0xff]
        %v1351 = vld [vmem:[#allocation2 + $0x98] sm:$0xff]
        %v1352 = vld [vmem:[#allocation2 + $0xa0] sm:$0xff]
        %v1353 = vld [vmem:[#allocation2 + $0xa8] sm:$0xff]
        %v1354 = vld [vmem:[#allocation2 + $0xb0] sm:$0xff]
        %v1355 = vld [vmem:[#allocation2 + $0xb8] sm:$0xff]
        %v1356 = vld [vmem:[#allocation2 + $0xc0] sm:$0xff]
        %v1357 = vld [vmem:[#allocation2 + $0xc8] sm:$0xff]
        %v1358 = vld [vmem:[#allocation2 + $0xd0] sm:$0xff]
        %v1359 = vld [vmem:[#allocation2 + $0xd8] sm:$0xff]
        %v1360 = vld [vmem:[#allocation2 + $0xe0] sm:$0xff]
        %v1361 = vld [vmem:[#allocation2 + $0xe8] sm:$0xff]
        %v1362 = vld [vmem:[#allocation2 + $0xf0] sm:$0xff]
        %v1363 = vld [vmem:[#allocation2 + $0xf8] sm:$0xff]
        %v1364 = vld [vmem:[#allocation2 + $0x100] sm:$0xff]
        %v1365 = vld [vmem:[#allocation2 + $0x108] sm:$0xff]
        %v1366 = vld [vmem:[#allocation2 + $0x110] sm:$0xff]
        %v1367 = vld [vmem:[#allocation2 + $0x118] sm:$0xff]
        %v1368 = vld [vmem:[#allocation2 + $0x120] sm:$0xff]
        %v1369 = vld [vmem:[#allocation2 + $0x128] sm:$0xff]
        %v1370 = vld [vmem:[#allocation2 + $0x130] sm:$0xff]
        %v1371 = vld [vmem:[#allocation2 + $0x138] sm:$0xff]
        %v1372 = vld [vmem:[#allocation2 + $0x140] sm:$0xff]
        %v1373 = vld [vmem:[#allocation2 + $0x148] sm:$0xff]
        %v1374 = vld [vmem:[#allocation2 + $0x150] sm:$0xff]
        %v1375 = vld [vmem:[#allocation2 + $0x158] sm:$0xff]
        %v1376 = vld [vmem:[#allocation2 + $0x160] sm:$0xff]
        %v1377 = vld [vmem:[#allocation2 + $0x168] sm:$0xff]
        %v1378 = vld [vmem:[#allocation2 + $0x170] sm:$0xff]
        %v1379 = vld [vmem:[#allocation2 + $0x178] sm:$0xff]
        %v1380 = vld [vmem:[#allocation2 + $0x180] sm:$0xff]
        %v1381 = vld [vmem:[#allocation2 + $0x188] sm:$0xff]
        %v1382 = vld [vmem:[#allocation2 + $0x190] sm:$0xff]
        %v1383 = vld [vmem:[#allocation2 + $0x198] sm:$0xff]
        %v1384 = vld [vmem:[#allocation2 + $0x1a0] sm:$0xff]
        %v1385 = vld [vmem:[#allocation2 + $0x1a8] sm:$0xff]
        %v1386 = vld [vmem:[#allocation2 + $0x1b0] sm:$0xff]
        %v1387 = vld [vmem:[#allocation2 + $0x1b8] sm:$0xff]
        %v1388 = vld [vmem:[#allocation2 + $0x1c0] sm:$0xff]
        %v1389 = vld [vmem:[#allocation2 + $0x1c8] sm:$0xff]
        %v1390 = vld [vmem:[#allocation2 + $0x1d0] sm:$0xff]
        %v1391 = vld [vmem:[#allocation2 + $0x1d8] sm:$0xff]
        %v1392 = vld [vmem:[#allocation2 + $0x1e0] sm:$0xff]
        %v1393 = vld [vmem:[#allocation2 + $0x1e8] sm:$0xff]
        %v1394 = vld [vmem:[#allocation2 + $0x1f0] sm:$0xff]
        %v1395 = vld [vmem:[#allocation2 + $0x1f8] sm:$0xff]
        %v1396 = vpack.c.bf16 %v1336, %v1332
        %v1397 = vpack.c.bf16 %v1337, %v1333
        %v1398 = vpack.c.bf16 %v1338, %v1334
        %v1399 = vpack.c.bf16 %v1339, %v1335
        %v1400 = vpack.c.bf16 %v1344, %v1340
        %v1401 = vpack.c.bf16 %v1345, %v1341
        %v1402 = vpack.c.bf16 %v1346, %v1342
        %v1403 = vpack.c.bf16 %v1347, %v1343
        %v1404 = vpack.c.bf16 %v1352, %v1348
        %v1405 = vpack.c.bf16 %v1353, %v1349
        %v1406 = vpack.c.bf16 %v1354, %v1350
        %v1407 = vpack.c.bf16 %v1355, %v1351
        %v1408 = vpack.c.bf16 %v1360, %v1356
        %v1409 = vpack.c.bf16 %v1361, %v1357
        %v1410 = vpack.c.bf16 %v1362, %v1358
        %v1411 = vpack.c.bf16 %v1363, %v1359
        %v1412 = vpack.c.bf16 %v1368, %v1364
        %v1413 = vpack.c.bf16 %v1369, %v1365
        %v1414 = vpack.c.bf16 %v1370, %v1366
        %v1415 = vpack.c.bf16 %v1371, %v1367
        %v1416 = vpack.c.bf16 %v1376, %v1372
        %v1417 = vpack.c.bf16 %v1377, %v1373
        %v1418 = vpack.c.bf16 %v1378, %v1374
        %v1419 = vpack.c.bf16 %v1379, %v1375
        %v1420 = vpack.c.bf16 %v1384, %v1380
        %v1421 = vpack.c.bf16 %v1385, %v1381
        %v1422 = vpack.c.bf16 %v1386, %v1382
        %v1423 = vpack.c.bf16 %v1387, %v1383
        %v1424 = vpack.c.bf16 %v1392, %v1388
        %v1425 = vpack.c.bf16 %v1393, %v1389
        %v1426 = vpack.c.bf16 %v1394, %v1390
        %v1427 = vpack.c.bf16 %v1395, %v1391
        %1428 = vmatprep.subr.bf16.mxu0 %v1397
        %1429 = vmatpush1.bf16.msra.mxu0 %v1396
        %1430 = vmatprep.subr.bf16.mxu0 %v1401
        %1431 = vmatpush1.bf16.msra.mxu0 %v1400
        %1432 = vmatprep.subr.bf16.mxu0 %v1405
        %1433 = vmatpush1.bf16.msra.mxu0 %v1404
        %1434 = vmatprep.subr.bf16.mxu0 %v1409
        %1435 = vmatpush1.bf16.msra.mxu0 %v1408
        %1436 = vmatprep.subr.bf16.mxu0 %v1413
        %1437 = vmatpush1.bf16.msra.mxu0 %v1412
        %1438 = vmatprep.subr.bf16.mxu0 %v1417
        %1439 = vmatpush1.bf16.msra.mxu0 %v1416
        %1440 = vmatprep.subr.bf16.mxu0 %v1421
        %1441 = vmatpush1.bf16.msra.mxu0 %v1420
        %1442 = vmatprep.subr.bf16.mxu0 %v1425
        %1443 = vmatpush1.bf16.msra.mxu0 %v1424
        %1444 = vmatprep.subr.bf16.mxu0 0
        %1445 = vmatpush1.bf16.msra.mxu0 0
        %1446 = vmatprep.subr.bf16.mxu0 0
        %1447 = vmatpush1.bf16.msra.mxu0 0
        %1448 = vmatprep.subr.bf16.mxu0 0
        %1449 = vmatpush1.bf16.msra.mxu0 0
        %1450 = vmatprep.subr.bf16.mxu0 0
        %1451 = vmatpush1.bf16.msra.mxu0 0
        %1452 = vmatprep.subr.bf16.mxu0 0
        %1453 = vmatpush1.bf16.msra.mxu0 0
        %1454 = vmatprep.subr.bf16.mxu0 0
        %1455 = vmatpush1.bf16.msra.mxu0 0
        %1456 = vmatprep.subr.bf16.mxu0 0
        %1457 = vmatpush1.bf16.msra.mxu0 0
        %1458 = vmatprep.subr.bf16.mxu0 0
        %1459 = vmatpush1.bf16.msra.mxu0 0
        %1460 = vmatprep.mubr.bf16.mxu0 0
        %1461 = vmatmul.mubr.bf16.gmra.mrb[0].mxu0 %v1167
        %v1462 = vpop.f32.mrb[0].mxu0
        %v1463 = vadd.f32 0.0, %v1462
        %v1464 = vpop.f32.mrb[0].mxu0
        %v1465 = vadd.f32 0.0, %v1464
        %v1466 = vpop.f32.mrb[0].mxu0
        %v1467 = vpop.f32.mrb[0].mxu0
        %1468 = vdwg.mxu0
        %1469 = vmatprep.subr.bf16.mxu0 %v1399
        %1470 = vmatpush1.bf16.msra.mxu0 %v1398
        %1471 = vmatprep.subr.bf16.mxu0 %v1403
        %1472 = vmatpush1.bf16.msra.mxu0 %v1402
        %1473 = vmatprep.subr.bf16.mxu0 %v1407
        %1474 = vmatpush1.bf16.msra.mxu0 %v1406
        %1475 = vmatprep.subr.bf16.mxu0 %v1411
        %1476 = vmatpush1.bf16.msra.mxu0 %v1410
        %1477 = vmatprep.subr.bf16.mxu0 %v1415
        %1478 = vmatpush1.bf16.msra.mxu0 %v1414
        %1479 = vmatprep.subr.bf16.mxu0 %v1419
        %1480 = vmatpush1.bf16.msra.mxu0 %v1418
        %1481 = vmatprep.subr.bf16.mxu0 %v1423
        %1482 = vmatpush1.bf16.msra.mxu0 %v1422
        %1483 = vmatprep.subr.bf16.mxu0 %v1427
        %1484 = vmatpush1.bf16.msra.mxu0 %v1426
        %1485 = vmatprep.subr.bf16.mxu0 0
        %1486 = vmatpush1.bf16.msra.mxu0 0
        %1487 = vmatprep.subr.bf16.mxu0 0
        %1488 = vmatpush1.bf16.msra.mxu0 0
        %1489 = vmatprep.subr.bf16.mxu0 0
        %1490 = vmatpush1.bf16.msra.mxu0 0
        %1491 = vmatprep.subr.bf16.mxu0 0
        %1492 = vmatpush1.bf16.msra.mxu0 0
        %1493 = vmatprep.subr.bf16.mxu0 0
        %1494 = vmatpush1.bf16.msra.mxu0 0
        %1495 = vmatprep.subr.bf16.mxu0 0
        %1496 = vmatpush1.bf16.msra.mxu0 0
        %1497 = vmatprep.subr.bf16.mxu0 0
        %1498 = vmatpush1.bf16.msra.mxu0 0
        %1499 = vmatprep.subr.bf16.mxu0 0
        %1500 = vmatpush1.bf16.msra.mxu0 0
        %1501 = vmatprep.mubr.bf16.mxu0 0
        %1502 = vmatmul.mubr.bf16.gmra.mrb[0].mxu0 %v1167
        %v1503 = vpop.f32.mrb[0].mxu0
        %v1504 = vadd.f32 0.0, %v1503
        %v1505 = vpop.f32.mrb[0].mxu0
        %v1506 = vadd.f32 0.0, %v1505
        %v1507 = vpop.f32.mrb[0].mxu0
        %v1508 = vpop.f32.mrb[0].mxu0
        %1509 = vdwg.mxu0
        %v1510 = vmax.f32 %v1463, 0.0
        %v1511 = vmax.f32 %v1465, 0.0
        %v1512 = vmax.f32 %v1504, 0.0
        %v1513 = vmax.f32 %v1506, 0.0
        %s1514 = scalar_lea.vmem [#allocation8], 4
        %v1515 = vld [vmem:[%s1514] sm:$0xf]
        %1516 = vrot.lane.b32.xlu0 %v1510, 17
        %v1517 = vpop.permute.xlu0 %1516
        %1518 = vrot.lane.b32.xlu0 %v1511, 17
        %v1519 = vpop.permute.xlu0 %1518
        %1520 = vrot.lane.b32.xlu0 %v1512, 17
        %v1521 = vpop.permute.xlu0 %1520
        %1522 = vrot.lane.b32.xlu0 %v1513, 17
        %v1523 = vpop.permute.xlu0 %1522
        %v1524 = vsel %vm341, %v1521, %v1523
        %v1525 = vsel %vm341, %v1519, %v1521
        %v1526 = vsel %vm341, %v1517, %v1519
        %v1527 = vsel %vm341, %v1523, %v1517
        %v1528 = vmul.f32 %v1527, %v349
        %v1529 = vmul.f32 %v1526, %v353
        %v1530 = vmul.f32 %v1525, %v357
        %v1531 = vmul.f32 %v1524, %v361
        %1532 = vst [vmem:[#allocation2] sm:$0xff] %v1528
        %1533 = vst [vmem:[#allocation2 + $0x8] sm:$0xff] %v1529
        %1534 = vst [vmem:[#allocation2 + $0x10] sm:$0xff] %v1530
        %1535 = vst [vmem:[#allocation2 + $0x18] sm:$0xff] %v1531
        %1536 = vrot.lane.b32.xlu0 %v1510, 16
        %v1537 = vpop.permute.xlu0 %1536
        %1538 = vrot.lane.b32.xlu0 %v1511, 16
        %v1539 = vpop.permute.xlu0 %1538
        %1540 = vrot.lane.b32.xlu0 %v1512, 16
        %v1541 = vpop.permute.xlu0 %1540
        %1542 = vrot.lane.b32.xlu0 %v1513, 16
        %v1543 = vpop.permute.xlu0 %1542
        %v1544 = vsel %vm378, %v1541, %v1543
        %v1545 = vsel %vm378, %v1539, %v1541
        %v1546 = vsel %vm378, %v1537, %v1539
        %v1547 = vsel %vm378, %v1543, %v1537
        %v1548 = vmul.f32 %v1547, %v386
        %v1549 = vmul.f32 %v1546, %v390
        %v1550 = vmul.f32 %v1545, %v394
        %v1551 = vmul.f32 %v1544, %v398
        %1552 = vst [vmem:[#allocation2 + $0x20] sm:$0xff] %v1548
        %1553 = vst [vmem:[#allocation2 + $0x28] sm:$0xff] %v1549
        %1554 = vst [vmem:[#allocation2 + $0x30] sm:$0xff] %v1550
        %1555 = vst [vmem:[#allocation2 + $0x38] sm:$0xff] %v1551
        %1556 = vrot.lane.b32.xlu0 %v1510, 15
        %v1557 = vpop.permute.xlu0 %1556
        %1558 = vrot.lane.b32.xlu0 %v1511, 15
        %v1559 = vpop.permute.xlu0 %1558
        %1560 = vrot.lane.b32.xlu0 %v1512, 15
        %v1561 = vpop.permute.xlu0 %1560
        %1562 = vrot.lane.b32.xlu0 %v1513, 15
        %v1563 = vpop.permute.xlu0 %1562
        %v1564 = vsel %vm415, %v1561, %v1563
        %v1565 = vsel %vm415, %v1559, %v1561
        %v1566 = vsel %vm415, %v1557, %v1559
        %v1567 = vsel %vm415, %v1563, %v1557
        %v1568 = vmul.f32 %v1567, %v423
        %v1569 = vmul.f32 %v1566, %v427
        %v1570 = vmul.f32 %v1565, %v431
        %v1571 = vmul.f32 %v1564, %v435
        %1572 = vst [vmem:[#allocation2 + $0x40] sm:$0xff] %v1568
        %1573 = vst [vmem:[#allocation2 + $0x48] sm:$0xff] %v1569
        %1574 = vst [vmem:[#allocation2 + $0x50] sm:$0xff] %v1570
        %1575 = vst [vmem:[#allocation2 + $0x58] sm:$0xff] %v1571
        %1576 = vrot.lane.b32.xlu0 %v1510, 1
        %v1577 = vpop.permute.xlu0 %1576
        %1578 = vrot.lane.b32.xlu0 %v1511, 1
        %v1579 = vpop.permute.xlu0 %1578
        %1580 = vrot.lane.b32.xlu0 %v1512, 1
        %v1581 = vpop.permute.xlu0 %1580
        %1582 = vrot.lane.b32.xlu0 %v1513, 1
        %v1583 = vpop.permute.xlu0 %1582
        %v1584 = vsel %vm452, %v1581, %v1583
        %v1585 = vsel %vm452, %v1579, %v1581
        %v1586 = vsel %vm452, %v1577, %v1579
        %v1587 = vsel %vm452, %v1583, %v1577
        %v1588 = vmul.f32 %v1587, %v460
        %v1589 = vmul.f32 %v1586, %v464
        %v1590 = vmul.f32 %v1585, %v468
        %v1591 = vmul.f32 %v1584, %v472
        %1592 = vst [vmem:[#allocation2 + $0x60] sm:$0xff] %v1588
        %1593 = vst [vmem:[#allocation2 + $0x68] sm:$0xff] %v1589
        %1594 = vst [vmem:[#allocation2 + $0x70] sm:$0xff] %v1590
        %1595 = vst [vmem:[#allocation2 + $0x78] sm:$0xff] %v1591
        %1596 = vst [vmem:[#allocation2 + $0x80] sm:$0xff] %v1510
        %1597 = vst [vmem:[#allocation2 + $0x88] sm:$0xff] %v1511
        %1598 = vst [vmem:[#allocation2 + $0x90] sm:$0xff] %v1512
        %1599 = vst [vmem:[#allocation2 + $0x98] sm:$0xff] %v1513
        %1600 = vrot.lane.b32.xlu0 %v1510, 127
        %v1601 = vpop.permute.xlu0 %1600
        %1602 = vrot.lane.b32.xlu0 %v1511, 127
        %v1603 = vpop.permute.xlu0 %1602
        %1604 = vrot.lane.b32.xlu0 %v1512, 127
        %v1605 = vpop.permute.xlu0 %1604
        %1606 = vrot.lane.b32.xlu0 %v1513, 127
        %v1607 = vpop.permute.xlu0 %1606
        %v1608 = vsel %vm493, %v1605, %v1607
        %v1609 = vsel %vm493, %v1603, %v1605
        %v1610 = vsel %vm493, %v1601, %v1603
        %v1611 = vsel %vm493, %v1607, %v1601
        %v1612 = vmul.f32 %v1610, %v501
        %v1613 = vmul.f32 %v1609, %v505
        %v1614 = vmul.f32 %v1608, %v509
        %v1615 = vmul.f32 %v1611, %v513
        %1616 = vst [vmem:[#allocation2 + $0xa0] sm:$0xff] %v1612
        %1617 = vst [vmem:[#allocation2 + $0xa8] sm:$0xff] %v1613
        %1618 = vst [vmem:[#allocation2 + $0xb0] sm:$0xff] %v1614
        %1619 = vst [vmem:[#allocation2 + $0xb8] sm:$0xff] %v1615
        %1620 = vrot.lane.b32.xlu0 %v1510, 113
        %v1621 = vpop.permute.xlu0 %1620
        %1622 = vrot.lane.b32.xlu0 %v1511, 113
        %v1623 = vpop.permute.xlu0 %1622
        %1624 = vrot.lane.b32.xlu0 %v1512, 113
        %v1625 = vpop.permute.xlu0 %1624
        %1626 = vrot.lane.b32.xlu0 %v1513, 113
        %v1627 = vpop.permute.xlu0 %1626
        %v1628 = vsel %vm530, %v1625, %v1627
        %v1629 = vsel %vm530, %v1623, %v1625
        %v1630 = vsel %vm530, %v1621, %v1623
        %v1631 = vsel %vm530, %v1627, %v1621
        %v1632 = vmul.f32 %v1630, %v538
        %v1633 = vmul.f32 %v1629, %v542
        %v1634 = vmul.f32 %v1628, %v546
        %v1635 = vmul.f32 %v1631, %v550
        %1636 = vst [vmem:[#allocation2 + $0xc0] sm:$0xff] %v1632
        %1637 = vst [vmem:[#allocation2 + $0xc8] sm:$0xff] %v1633
        %1638 = vst [vmem:[#allocation2 + $0xd0] sm:$0xff] %v1634
        %1639 = vst [vmem:[#allocation2 + $0xd8] sm:$0xff] %v1635
        %1640 = vrot.lane.b32.xlu0 %v1510, 112
        %v1641 = vpop.permute.xlu0 %1640
        %1642 = vrot.lane.b32.xlu0 %v1511, 112
        %v1643 = vpop.permute.xlu0 %1642
        %1644 = vrot.lane.b32.xlu0 %v1512, 112
        %v1645 = vpop.permute.xlu0 %1644
        %1646 = vrot.lane.b32.xlu0 %v1513, 112
        %v1647 = vpop.permute.xlu0 %1646
        %v1648 = vsel %vm567, %v1645, %v1647
        %v1649 = vsel %vm567, %v1643, %v1645
        %v1650 = vsel %vm567, %v1641, %v1643
        %v1651 = vsel %vm567, %v1647, %v1641
        %v1652 = vmul.f32 %v1650, %v575
        %v1653 = vmul.f32 %v1649, %v579
        %v1654 = vmul.f32 %v1648, %v583
        %v1655 = vmul.f32 %v1651, %v587
        %1656 = vst [vmem:[#allocation2 + $0xe0] sm:$0xff] %v1652
        %1657 = vst [vmem:[#allocation2 + $0xe8] sm:$0xff] %v1653
        %1658 = vst [vmem:[#allocation2 + $0xf0] sm:$0xff] %v1654
        %1659 = vst [vmem:[#allocation2 + $0xf8] sm:$0xff] %v1655
        %1660 = vrot.lane.b32.xlu0 %v1510, 111
        %v1661 = vpop.permute.xlu0 %1660
        %1662 = vrot.lane.b32.xlu0 %v1511, 111
        %v1663 = vpop.permute.xlu0 %1662
        %1664 = vrot.lane.b32.xlu0 %v1512, 111
        %v1665 = vpop.permute.xlu0 %1664
        %1666 = vrot.lane.b32.xlu0 %v1513, 111
        %v1667 = vpop.permute.xlu0 %1666
        %v1668 = vsel %vm604, %v1665, %v1667
        %v1669 = vsel %vm604, %v1663, %v1665
        %v1670 = vsel %vm604, %v1661, %v1663
        %v1671 = vsel %vm604, %v1667, %v1661
        %v1672 = vmul.f32 %v1670, %v612
        %v1673 = vmul.f32 %v1669, %v616
        %v1674 = vmul.f32 %v1668, %v620
        %v1675 = vmul.f32 %v1671, %v624
        %1676 = vst [vmem:[#allocation2 + $0x100] sm:$0xff] %v1672
        %1677 = vst [vmem:[#allocation2 + $0x108] sm:$0xff] %v1673
        %1678 = vst [vmem:[#allocation2 + $0x110] sm:$0xff] %v1674
        %1679 = vst [vmem:[#allocation2 + $0x118] sm:$0xff] %v1675
        %v1680 = vld [vmem:[#allocation2] sm:$0xff]
        %v1681 = vld [vmem:[#allocation2 + $0x8] sm:$0xff]
        %v1682 = vld [vmem:[#allocation2 + $0x10] sm:$0xff]
        %v1683 = vld [vmem:[#allocation2 + $0x18] sm:$0xff]
        %v1684 = vld [vmem:[#allocation2 + $0x20] sm:$0xff]
        %v1685 = vld [vmem:[#allocation2 + $0x28] sm:$0xff]
        %v1686 = vld [vmem:[#allocation2 + $0x30] sm:$0xff]
        %v1687 = vld [vmem:[#allocation2 + $0x38] sm:$0xff]
        %v1688 = vld [vmem:[#allocation2 + $0x40] sm:$0xff]
        %v1689 = vld [vmem:[#allocation2 + $0x48] sm:$0xff]
        %v1690 = vld [vmem:[#allocation2 + $0x50] sm:$0xff]
        %v1691 = vld [vmem:[#allocation2 + $0x58] sm:$0xff]
        %v1692 = vld [vmem:[#allocation2 + $0x60] sm:$0xff]
        %v1693 = vld [vmem:[#allocation2 + $0x68] sm:$0xff]
        %v1694 = vld [vmem:[#allocation2 + $0x70] sm:$0xff]
        %v1695 = vld [vmem:[#allocation2 + $0x78] sm:$0xff]
        %v1696 = vld [vmem:[#allocation2 + $0x80] sm:$0xff]
        %v1697 = vld [vmem:[#allocation2 + $0x88] sm:$0xff]
        %v1698 = vld [vmem:[#allocation2 + $0x90] sm:$0xff]
        %v1699 = vld [vmem:[#allocation2 + $0x98] sm:$0xff]
        %v1700 = vld [vmem:[#allocation2 + $0xa0] sm:$0xff]
        %v1701 = vld [vmem:[#allocation2 + $0xa8] sm:$0xff]
        %v1702 = vld [vmem:[#allocation2 + $0xb0] sm:$0xff]
        %v1703 = vld [vmem:[#allocation2 + $0xb8] sm:$0xff]
        %v1704 = vld [vmem:[#allocation2 + $0xc0] sm:$0xff]
        %v1705 = vld [vmem:[#allocation2 + $0xc8] sm:$0xff]
        %v1706 = vld [vmem:[#allocation2 + $0xd0] sm:$0xff]
        %v1707 = vld [vmem:[#allocation2 + $0xd8] sm:$0xff]
        %v1708 = vld [vmem:[#allocation2 + $0xe0] sm:$0xff]
        %v1709 = vld [vmem:[#allocation2 + $0xe8] sm:$0xff]
        %v1710 = vld [vmem:[#allocation2 + $0xf0] sm:$0xff]
        %v1711 = vld [vmem:[#allocation2 + $0xf8] sm:$0xff]
        %v1712 = vld [vmem:[#allocation2 + $0x100] sm:$0xff]
        %v1713 = vld [vmem:[#allocation2 + $0x108] sm:$0xff]
        %v1714 = vld [vmem:[#allocation2 + $0x110] sm:$0xff]
        %v1715 = vld [vmem:[#allocation2 + $0x118] sm:$0xff]
        %v1716 = vld [vmem:[#allocation2 + $0x120] sm:$0xff]
        %v1717 = vld [vmem:[#allocation2 + $0x128] sm:$0xff]
        %v1718 = vld [vmem:[#allocation2 + $0x130] sm:$0xff]
        %v1719 = vld [vmem:[#allocation2 + $0x138] sm:$0xff]
        %v1720 = vld [vmem:[#allocation2 + $0x140] sm:$0xff]
        %v1721 = vld [vmem:[#allocation2 + $0x148] sm:$0xff]
        %v1722 = vld [vmem:[#allocation2 + $0x150] sm:$0xff]
        %v1723 = vld [vmem:[#allocation2 + $0x158] sm:$0xff]
        %v1724 = vld [vmem:[#allocation2 + $0x160] sm:$0xff]
        %v1725 = vld [vmem:[#allocation2 + $0x168] sm:$0xff]
        %v1726 = vld [vmem:[#allocation2 + $0x170] sm:$0xff]
        %v1727 = vld [vmem:[#allocation2 + $0x178] sm:$0xff]
        %v1728 = vld [vmem:[#allocation2 + $0x180] sm:$0xff]
        %v1729 = vld [vmem:[#allocation2 + $0x188] sm:$0xff]
        %v1730 = vld [vmem:[#allocation2 + $0x190] sm:$0xff]
        %v1731 = vld [vmem:[#allocation2 + $0x198] sm:$0xff]
        %v1732 = vld [vmem:[#allocation2 + $0x1a0] sm:$0xff]
        %v1733 = vld [vmem:[#allocation2 + $0x1a8] sm:$0xff]
        %v1734 = vld [vmem:[#allocation2 + $0x1b0] sm:$0xff]
        %v1735 = vld [vmem:[#allocation2 + $0x1b8] sm:$0xff]
        %v1736 = vld [vmem:[#allocation2 + $0x1c0] sm:$0xff]
        %v1737 = vld [vmem:[#allocation2 + $0x1c8] sm:$0xff]
        %v1738 = vld [vmem:[#allocation2 + $0x1d0] sm:$0xff]
        %v1739 = vld [vmem:[#allocation2 + $0x1d8] sm:$0xff]
        %v1740 = vld [vmem:[#allocation2 + $0x1e0] sm:$0xff]
        %v1741 = vld [vmem:[#allocation2 + $0x1e8] sm:$0xff]
        %v1742 = vld [vmem:[#allocation2 + $0x1f0] sm:$0xff]
        %v1743 = vld [vmem:[#allocation2 + $0x1f8] sm:$0xff]
        %v1744 = vpack.c.bf16 %v1684, %v1680
        %v1745 = vpack.c.bf16 %v1685, %v1681
        %v1746 = vpack.c.bf16 %v1686, %v1682
        %v1747 = vpack.c.bf16 %v1687, %v1683
        %v1748 = vpack.c.bf16 %v1692, %v1688
        %v1749 = vpack.c.bf16 %v1693, %v1689
        %v1750 = vpack.c.bf16 %v1694, %v1690
        %v1751 = vpack.c.bf16 %v1695, %v1691
        %v1752 = vpack.c.bf16 %v1700, %v1696
        %v1753 = vpack.c.bf16 %v1701, %v1697
        %v1754 = vpack.c.bf16 %v1702, %v1698
        %v1755 = vpack.c.bf16 %v1703, %v1699
        %v1756 = vpack.c.bf16 %v1708, %v1704
        %v1757 = vpack.c.bf16 %v1709, %v1705
        %v1758 = vpack.c.bf16 %v1710, %v1706
        %v1759 = vpack.c.bf16 %v1711, %v1707
        %v1760 = vpack.c.bf16 %v1716, %v1712
        %v1761 = vpack.c.bf16 %v1717, %v1713
        %v1762 = vpack.c.bf16 %v1718, %v1714
        %v1763 = vpack.c.bf16 %v1719, %v1715
        %v1764 = vpack.c.bf16 %v1724, %v1720
        %v1765 = vpack.c.bf16 %v1725, %v1721
        %v1766 = vpack.c.bf16 %v1726, %v1722
        %v1767 = vpack.c.bf16 %v1727, %v1723
        %v1768 = vpack.c.bf16 %v1732, %v1728
        %v1769 = vpack.c.bf16 %v1733, %v1729
        %v1770 = vpack.c.bf16 %v1734, %v1730
        %v1771 = vpack.c.bf16 %v1735, %v1731
        %v1772 = vpack.c.bf16 %v1740, %v1736
        %v1773 = vpack.c.bf16 %v1741, %v1737
        %v1774 = vpack.c.bf16 %v1742, %v1738
        %v1775 = vpack.c.bf16 %v1743, %v1739
        %1776 = vmatprep.subr.bf16.mxu0 %v1745
        %1777 = vmatpush1.bf16.msra.mxu0 %v1744
        %1778 = vmatprep.subr.bf16.mxu0 %v1749
        %1779 = vmatpush1.bf16.msra.mxu0 %v1748
        %1780 = vmatprep.subr.bf16.mxu0 %v1753
        %1781 = vmatpush1.bf16.msra.mxu0 %v1752
        %1782 = vmatprep.subr.bf16.mxu0 %v1757
        %1783 = vmatpush1.bf16.msra.mxu0 %v1756
        %1784 = vmatprep.subr.bf16.mxu0 %v1761
        %1785 = vmatpush1.bf16.msra.mxu0 %v1760
        %1786 = vmatprep.subr.bf16.mxu0 %v1765
        %1787 = vmatpush1.bf16.msra.mxu0 %v1764
        %1788 = vmatprep.subr.bf16.mxu0 %v1769
        %1789 = vmatpush1.bf16.msra.mxu0 %v1768
        %1790 = vmatprep.subr.bf16.mxu0 %v1773
        %1791 = vmatpush1.bf16.msra.mxu0 %v1772
        %1792 = vmatprep.subr.bf16.mxu0 0
        %1793 = vmatpush1.bf16.msra.mxu0 0
        %1794 = vmatprep.subr.bf16.mxu0 0
        %1795 = vmatpush1.bf16.msra.mxu0 0
        %1796 = vmatprep.subr.bf16.mxu0 0
        %1797 = vmatpush1.bf16.msra.mxu0 0
        %1798 = vmatprep.subr.bf16.mxu0 0
        %1799 = vmatpush1.bf16.msra.mxu0 0
        %1800 = vmatprep.subr.bf16.mxu0 0
        %1801 = vmatpush1.bf16.msra.mxu0 0
        %1802 = vmatprep.subr.bf16.mxu0 0
        %1803 = vmatpush1.bf16.msra.mxu0 0
        %1804 = vmatprep.subr.bf16.mxu0 0
        %1805 = vmatpush1.bf16.msra.mxu0 0
        %1806 = vmatprep.subr.bf16.mxu0 0
        %1807 = vmatpush1.bf16.msra.mxu0 0
        %1808 = vmatprep.mubr.bf16.mxu0 0
        %1809 = vmatmul.mubr.bf16.gmra.mrb[0].mxu0 %v1515
        %v1810 = vpop.f32.mrb[0].mxu0
        %v1811 = vadd.f32 0.0, %v1810
        %v1812 = vpop.f32.mrb[0].mxu0
        %v1813 = vadd.f32 0.0, %v1812
        %v1814 = vpop.f32.mrb[0].mxu0
        %v1815 = vpop.f32.mrb[0].mxu0
        %1816 = vdwg.mxu0
        %1817 = vmatprep.subr.bf16.mxu0 %v1747
        %1818 = vmatpush1.bf16.msra.mxu0 %v1746
        %1819 = vmatprep.subr.bf16.mxu0 %v1751
        %1820 = vmatpush1.bf16.msra.mxu0 %v1750
        %1821 = vmatprep.subr.bf16.mxu0 %v1755
        %1822 = vmatpush1.bf16.msra.mxu0 %v1754
        %1823 = vmatprep.subr.bf16.mxu0 %v1759
        %1824 = vmatpush1.bf16.msra.mxu0 %v1758
        %1825 = vmatprep.subr.bf16.mxu0 %v1763
        %1826 = vmatpush1.bf16.msra.mxu0 %v1762
        %1827 = vmatprep.subr.bf16.mxu0 %v1767
        %1828 = vmatpush1.bf16.msra.mxu0 %v1766
        %1829 = vmatprep.subr.bf16.mxu0 %v1771
        %1830 = vmatpush1.bf16.msra.mxu0 %v1770
        %1831 = vmatprep.subr.bf16.mxu0 %v1775
        %1832 = vmatpush1.bf16.msra.mxu0 %v1774
        %1833 = vmatprep.subr.bf16.mxu0 0
        %1834 = vmatpush1.bf16.msra.mxu0 0
        %1835 = vmatprep.subr.bf16.mxu0 0
        %1836 = vmatpush1.bf16.msra.mxu0 0
        %1837 = vmatprep.subr.bf16.mxu0 0
        %1838 = vmatpush1.bf16.msra.mxu0 0
        %1839 = vmatprep.subr.bf16.mxu0 0
        %1840 = vmatpush1.bf16.msra.mxu0 0
        %1841 = vmatprep.subr.bf16.mxu0 0
        %1842 = vmatpush1.bf16.msra.mxu0 0
        %1843 = vmatprep.subr.bf16.mxu0 0
        %1844 = vmatpush1.bf16.msra.mxu0 0
        %1845 = vmatprep.subr.bf16.mxu0 0
        %1846 = vmatpush1.bf16.msra.mxu0 0
        %1847 = vmatprep.subr.bf16.mxu0 0
        %1848 = vmatpush1.bf16.msra.mxu0 0
        %1849 = vmatprep.mubr.bf16.mxu0 0
        %1850 = vmatmul.mubr.bf16.gmra.mrb[0].mxu0 %v1515
        %v1851 = vpop.f32.mrb[0].mxu0
        %v1852 = vadd.f32 0.0, %v1851
        %v1853 = vpop.f32.mrb[0].mxu0
        %v1854 = vadd.f32 0.0, %v1853
        %v1855 = vpop.f32.mrb[0].mxu0
        %v1856 = vpop.f32.mrb[0].mxu0
        %1857 = vdwg.mxu0
        %v1858 = vadd.f32 %v1162, %v1811
        %v1859 = vadd.f32 %v1163, %v1813
        %v1860 = vadd.f32 %v1164, %v1852
        %v1861 = vadd.f32 %v1165, %v1854
        %v1862 = vmax.f32 %v1858, 0.0
        %v1863 = vmax.f32 %v1859, 0.0
        %v1864 = vmax.f32 %v1860, 0.0
        %v1865 = vmax.f32 %v1861, 0.0
        %1866 = vst [vmem:[%s257] sm:$0xff] %v1862
        %1867 = vst [vmem:[%s257 + $0x8] sm:$0xff] %v1863
        %1868 = vst [vmem:[%s257 + $0x10] sm:$0xff] %v1864
        %1869 = vst [vmem:[%s257 + $0x18] sm:$0xff] %v1865
        %s1870 = sand.u32 %s120, 1
        %s1871 = scalar_lea.sflag [#allocation5], %s1870
        %s1872 = sand.u32 %s120, 1
        %s1873 = smul.addr %s1872, 32
        %s1874 = scalar_lea.vmem [#allocation11], %s1873
        // Predicated region
        $region53: #{tpu_custom_call.1} parent=35 // pred_check
          %p1875 = pneg %p130
        $region54: #{tpu_custom_call.1} parent=35 // pred_check_branch
          %1877 = sbr.rel (%p1875) target = $region56
        $region55: #{tpu_custom_call.1} parent=35 // pred_region
          %s1878 = smul.u32 4, %s23
          %s1880 = ssub.s32 512, 512
          %1881 = vsyncadd %s1871, %s1880
          %s1882 = smul.addr %s1878, 128
          %s1883 = scalar_lea.hbm %s4, %s1882
          %s1885 = sshll.u32 %s1874, 4
          %s1886 = int_to_ptr.vmem [resolvable:$true] %s1885
          %1888 = dma.vmem_to_hbm [thread:$0]  %s1886, 512, %s1883, %s1871
        $region56: #{tpu_custom_call.1} parent=35 // pred_fallthru
          _
      $region36: #{tpu_custom_call.1} parent=5 // pred_fallthru
        _
      %p1889 = scmp.le.s32.totalorder 2, %s18
      // Predicated region
      $region57: #{tpu_custom_call.1} parent=5 // pred_check
        %p1890 = pneg %p1889
      $region58: #{tpu_custom_call.1} parent=5 // pred_check_branch
        %1892 = sbr.rel (%p1890) target = $region60
      $region59: #{tpu_custom_call.1} parent=5 // pred_region
        %s1893 = ssub.s32 %s18, 2
        // Predicated region
        $region61: #{tpu_custom_call.1} parent=59 // pred_check
          %p1894 = pneg %p136
        $region62: #{tpu_custom_call.1} parent=59 // pred_check_branch
          %1896 = sbr.rel (%p1894) target = $region64
        $region63: #{tpu_custom_call.1} parent=59 // pred_region
          %s1897 = sand.u32 %s121, 1
          %s1898 = scalar_lea.sflag [#allocation5], %s1897
          %s1899 = sand.u32 %s121, 1
          %s1900 = smul.addr %s1899, 32
          %s1901 = scalar_lea.vmem [#allocation11], %s1900
          %1902 = dma.done %s1898, 512
        $region64: #{tpu_custom_call.1} parent=59 // pred_fallthru
          _
      $region60: #{tpu_custom_call.1} parent=5 // pred_fallthru
        _
    $region6: #{tpu_custom_call.1} parent=1 // loop_footer
      %s22 = sadd.s32 1, %s18
    $region7: #{tpu_custom_call.1} parent=1 // loop_footer_branch
      %17 = sbr.rel target = $region3
    $region8: #{tpu_custom_call.1} parent=1 // loop_exit
      _
    %1903 = vsyncpa [#allocation4], 1
    %s1904 = scalar_lea.sflag [#allocation4], 1
    %1905 = vsyncpa %s1904, 1
    %1906 = vsyncpa [#allocation7], 1
    %1907 = vsyncpa [#allocation10], 1
    %1908 = vsyncpa [#allocation5], 1
    %s1909 = scalar_lea.sflag [#allocation5], 1
    %1910 = vsyncpa %s1909, 1

</llo_original>
